<compile_context>
chip_gen: v6e
topology: v6e:2x2x1
jax: 0.10.0
libtpu: 0.0.40
codegen_flags: <defaults>
</compile_context>

<pallas_src>
import jax
import jax.numpy as jnp
from jax.experimental import pallas as pl
from jax.experimental.pallas import tpu as pltpu


def _wmf_loss_kernel(x_ref, us_ref, vt_ref, psum_ref, acc_ref):
    """One (user-tile i, item-tile j) grid step.

    x_ref    : (tu, ti)   bf16 train-matrix tile (BCE "input", values in [0,1])
    us_ref   : (tu, dfac) f32  (U * sigma) tile  (re-fetched only when i changes)
    vt_ref   : (dfac, ti) f32  Vt tile           (re-fetched only when j changes)
    psum_ref : (8, 128)   f32  lane-dense per-user-tile partial sum (last-j write)
    acc_ref  : (8, 128)   f32  VMEM scratch accumulator
    """
    j = pl.program_id(1)

    @pl.when(j == 0)
    def _():
        acc_ref[...] = jnp.zeros_like(acc_ref)

    # Reconstruction (the BCE "target"):  (U * sigma) @ Vt  -> (tu, ti) f32.
    # K = dfac is deliberately left small; the kernel is HBM-bound on X.
    target = jnp.dot(us_ref[...], vt_ref[...],
                     preferred_element_type=jnp.float32)

    x = x_ref[...].astype(jnp.float32)
    # torch.nn.functional.binary_cross_entropy clamps log terms at -100.
    log_x = jnp.maximum(jnp.log(x), -100.0)
    log_1mx = jnp.maximum(jnp.log(1.0 - x), -100.0)
    bce = -(target * log_x + (1.0 - target) * log_1mx)           # (tu, ti) f32

    # Fold the tile down to one (8,128) vreg with pure VPU adds.  All slices
    # are vreg-boundary aligned; no per-step cross-lane/scalar reduce.
    tu, ti = bce.shape
    part = bce[:, 0:128]
    for c in range(1, ti // 128):                                 # lane fold
        part = part + bce[:, c * 128:(c + 1) * 128]               # (tu, 128)
    blk = part[0:8, :]
    for r in range(1, tu // 8):                                   # sublane fold
        blk = blk + part[r * 8:(r + 1) * 8, :]                    # (8, 128)
    acc_ref[...] += blk

    # Emit the partial sum once, on the last item tile of this user tile.
    @pl.when(j == pl.num_programs(1) - 1)
    def _():
        psum_ref[...] = acc_ref[...]


def _round_up(x, m):
    return (x + m - 1) // m * m


def wmf_loss_pallas(x, u_s, vt, *, max_tu=256, max_ti=1024):
    """mean(BCE(input=x, target=u_s @ vt)) computed with a Pallas TPU kernel."""
    n_users, n_items = x.shape
    dfac = u_s.shape[1]
    assert vt.shape == (dfac, n_items)

    # Tile selection: multiples of the (8,128) vreg shape, capped so the
    # double-buffered footprint stays far below v7x's 64 MiB VMEM.
    tu = min(max_tu, _round_up(n_users, 8))
    ti = min(max_ti, _round_up(n_items, 128))

    # Zero-pad to full tiles.  Padded entries contribute exactly 0 BCE:
    # x = 0 -> log(1-x) = 0, and target = 0 because padded u_s rows / vt
    # columns are zero, so -(0*log_x + 1*0) = 0.
    up, ip = _round_up(n_users, tu), _round_up(n_items, ti)
    if (up, ip) != (n_users, n_items):
        x = jnp.pad(x, ((0, up - n_users), (0, ip - n_items)))
        u_s = jnp.pad(u_s, ((0, up - n_users), (0, 0)))
        vt = jnp.pad(vt, ((0, 0), (0, ip - n_items)))

    grid = (up // tu, ip // ti)

    # Double-buffered VMEM estimate; raise the scoped limit (v5e defaults to
    # 16 MiB) but stay well under v7x's 64 MiB physical VMEM.
    vmem_est = (2 * (tu * ti * x.dtype.itemsize + tu * dfac * 4
                     + dfac * ti * 4 + 8 * 128 * 4) + 8 * 128 * 4)
    vmem_limit = int(min(48 * 2**20, max(32 * 2**20, 3 * vmem_est)))

    psums = pl.pallas_call(
        _wmf_loss_kernel,
        out_shape=jax.ShapeDtypeStruct((grid[0] * 8, 128), jnp.float32),
        grid_spec=pltpu.PrefetchScalarGridSpec(
            num_scalar_prefetch=0,
            grid=grid,
            in_specs=[
                pl.BlockSpec((tu, ti), lambda i, j: (i, j)),     # X (streams)
                pl.BlockSpec((tu, dfac), lambda i, j: (i, 0)),   # U*sigma
                pl.BlockSpec((dfac, ti), lambda i, j: (0, j)),   # Vt
            ],
            out_specs=pl.BlockSpec((8, 128), lambda i, j: (i, 0)),
            scratch_shapes=[pltpu.VMEM((8, 128), jnp.float32)],
        ),
        compiler_params=pltpu.CompilerParams(
            dimension_semantics=("parallel", "arbitrary"),
            vmem_limit_bytes=vmem_limit),
    )(x, u_s, vt)

    # Final tree reduction + mean scaling in plain JAX (uses the ORIGINAL
    # element count so zero-padding does not bias the mean).
    return jnp.sum(psums) / jnp.float32(n_users * n_items)


def wmf_forward(train_matrix, dfac, *, max_tu=256, max_ti=1024):
    """WMF.forward: truncated-SVD factorization + BCE reconstruction loss."""
    # --- glue (plain JAX): exact truncated SVD ---
    # TODO(synk): randomized_svd(n_components=dfac, random_state=123) replaced
    # by an exact truncated SVD; the iterative randomized projection has no
    # clean Pallas equivalent.
    U, s, Vt = jnp.linalg.svd(train_matrix.astype(jnp.float32),
                              full_matrices=False)
    U = U[:, :dfac]                 # user_embedding        (n_users, dfac)
    s = s[:dfac]                    # singular values       (dfac,)
    Vt = Vt[:dfac, :]               # item_embedding.T      (dfac, n_items)
    u_s = U * s[None, :]            # U @ diag(sigma)       (n_users, dfac)

    # --- hot path (Pallas): reconstruction matmul + BCE mean reduction ---
    # Implicit-feedback matrix is binary {0,1}: bf16 is exact and halves the
    # HBM traffic of the bandwidth-bound X stream.
    loss = wmf_loss_pallas(train_matrix.astype(jnp.bfloat16),
                           u_s.astype(jnp.float32),
                           Vt.astype(jnp.float32),
                           max_tu=max_tu, max_ti=max_ti)
    return loss


def _reference_loss(train_matrix, dfac):
    """Pure-JAX reference matching torch.nn.functional.binary_cross_entropy."""
    U, s, Vt = jnp.linalg.svd(train_matrix, full_matrices=False)
    target = (U[:, :dfac] * s[:dfac][None, :]) @ Vt[:dfac, :]
    x = train_matrix
    log_x = jnp.maximum(jnp.log(x), -100.0)
    log_1mx = jnp.maximum(jnp.log(1.0 - x), -100.0)
    return jnp.mean(-(target * log_x + (1.0 - target) * log_1mx))


if __name__ == "__main__":
    n_users, n_items, dfac = 64, 1024, 8

    key = jax.random.PRNGKey(0)
    # Synthetic implicit-feedback matrix (binary), like train_matrix.toarray().
    train_matrix = jax.random.bernoulli(
        key, p=0.1, shape=(n_users, n_items)).astype(jnp.float32)

    # 1) default (large-tile) path
    loss = jax.block_until_ready(wmf_forward(train_matrix, dfac))
    ref = jax.block_until_ready(_reference_loss(train_matrix, dfac))
    assert jnp.allclose(loss, ref, rtol=1e-3, atol=1e-3), (loss, ref)

    # 2) forced multi-tile grid + tail padding (n_items not a multiple of 128):
    #    exercises per-tile partial sums, j-accumulation and parallel i axis.
    tm2 = train_matrix[:, :1000]
    loss2 = jax.block_until_ready(wmf_forward(tm2, dfac, max_tu=32, max_ti=256))
    ref2 = jax.block_until_ready(_reference_loss(tm2, dfac))
    assert jnp.allclose(loss2, ref2, rtol=1e-3, atol=1e-3), (loss2, ref2)

    print("KERNEL_OK")
</pallas_src>

<mosaic_0001>
module attributes {stable_mosaic.version = 11 : i64} {
  func.func @_wmf_loss_kernel(%arg0: i32, %arg1: i32, %arg2: memref<64x1024xbf16, #tpu.memory_space<vmem>>, %arg3: memref<64x8xf32, #tpu.memory_space<vmem>>, %arg4: memref<8x1024xf32, #tpu.memory_space<vmem>>, %arg5: memref<8x128xf32, #tpu.memory_space<vmem>>, %arg6: memref<8x128xf32, #tpu.memory_space<vmem>>) attributes {dimension_semantics = [#tpu.dimension_semantics<parallel>, #tpu.dimension_semantics<arbitrary>], iteration_bounds = array<i64: 1, 1>, scalar_prefetch = 0 : i64, scratch_operands = 1 : i64, tpu.core_type = #tpu.core_type<tc>, window_params = [{transform_indices = @transform_0, window_bounds = array<i64: 64, 1024>}, {transform_indices = @transform_1, window_bounds = array<i64: 64, 8>}, {transform_indices = @transform_2, window_bounds = array<i64: 8, 1024>}, {transform_indices = @transform_3, window_bounds = array<i64: 8, 128>}]} {
    %c0_i32 = arith.constant 0 : i32
    %0 = arith.cmpi eq, %arg1, %c0_i32 : i32
    %1 = arith.extui %0 : i1 to i32
    %c0_i32_0 = arith.constant 0 : i32
    %2 = arith.cmpi ne, %1, %c0_i32_0 : i32
    scf.if %2 {
      %cst_17 = arith.constant 0.000000e+00 : f32
      %59 = vector.broadcast %cst_17 : f32 to vector<8x128xf32>
      %c0_18 = arith.constant 0 : index
      %c0_19 = arith.constant 0 : index
      %60 = vector.load %arg6[%c0_18, %c0_19] : memref<8x128xf32, #tpu.memory_space<vmem>>, vector<8x128xf32>
      tpu.vector_store %arg6[%c0_18, %c0_19], %59 {strides = array<i32>} : memref<8x128xf32, #tpu.memory_space<vmem>>, vector<8x128xf32>,
    } else {
    }
    %c0 = arith.constant 0 : index
    %c0_1 = arith.constant 0 : index
    %3 = vector.load %arg3[%c0, %c0_1] : memref<64x8xf32, #tpu.memory_space<vmem>>, vector<64x8xf32>
    %c0_2 = arith.constant 0 : index
    %c0_3 = arith.constant 0 : index
    %4 = vector.load %arg4[%c0_2, %c0_3] : memref<8x1024xf32, #tpu.memory_space<vmem>>, vector<8x1024xf32>
    %cst = arith.constant dense<0.000000e+00> : vector<64x1024xf32>
    %5 = tpu.matmul %3, %4, %cst {dimension_numbers = #tpu.dot_dimension_numbers<[1], [0], [0], [1], [0, 0, 1, 1], [], []>} : vector<64x8xf32>, vector<8x1024xf32>, vector<64x1024xf32> -> vector<64x1024xf32>
    %c0_4 = arith.constant 0 : index
    %c0_5 = arith.constant 0 : index
    %6 = vector.load %arg2[%c0_4, %c0_5] : memref<64x1024xbf16, #tpu.memory_space<vmem>>, vector<64x1024xbf16>
    %7 = arith.extf %6 : vector<64x1024xbf16> to vector<64x1024xf32>
    %8 = math.log %7 : vector<64x1024xf32>
    %cst_6 = arith.constant -1.000000e+02 : f32
    %9 = vector.broadcast %cst_6 : f32 to vector<64x1024xf32>
    %10 = arith.maximumf %8, %9 : vector<64x1024xf32>
    %cst_7 = arith.constant 1.000000e+00 : f32
    %11 = vector.broadcast %cst_7 : f32 to vector<64x1024xf32>
    %12 = arith.subf %11, %7 : vector<64x1024xf32>
    %13 = math.log %12 : vector<64x1024xf32>
    %cst_8 = arith.constant -1.000000e+02 : f32
    %14 = vector.broadcast %cst_8 : f32 to vector<64x1024xf32>
    %15 = arith.maximumf %13, %14 : vector<64x1024xf32>
    %16 = arith.mulf %5, %10 : vector<64x1024xf32>
    %cst_9 = arith.constant 1.000000e+00 : f32
    %17 = vector.broadcast %cst_9 : f32 to vector<64x1024xf32>
    %18 = arith.subf %17, %5 : vector<64x1024xf32>
    %19 = arith.mulf %18, %15 : vector<64x1024xf32>
    %20 = arith.addf %16, %19 : vector<64x1024xf32>
    %cst_10 = arith.constant 0.000000e+00 : f32
    %21 = vector.broadcast %cst_10 : f32 to vector<64x1024xf32>
    %22 = arith.subf %21, %20 : vector<64x1024xf32>
    %23 = vector.extract_strided_slice %22 {offsets = [0, 0], sizes = [64, 128], strides = [1, 1]} : vector<64x1024xf32> to vector<64x128xf32>
    %24 = vector.extract_strided_slice %22 {offsets = [0, 128], sizes = [64, 128], strides = [1, 1]} : vector<64x1024xf32> to vector<64x128xf32>
    %25 = arith.addf %23, %24 : vector<64x128xf32>
    %26 = vector.extract_strided_slice %22 {offsets = [0, 256], sizes = [64, 128], strides = [1, 1]} : vector<64x1024xf32> to vector<64x128xf32>
    %27 = arith.addf %25, %26 : vector<64x128xf32>
    %28 = vector.extract_strided_slice %22 {offsets = [0, 384], sizes = [64, 128], strides = [1, 1]} : vector<64x1024xf32> to vector<64x128xf32>
    %29 = arith.addf %27, %28 : vector<64x128xf32>
    %30 = vector.extract_strided_slice %22 {offsets = [0, 512], sizes = [64, 128], strides = [1, 1]} : vector<64x1024xf32> to vector<64x128xf32>
    %31 = arith.addf %29, %30 : vector<64x128xf32>
    %32 = vector.extract_strided_slice %22 {offsets = [0, 640], sizes = [64, 128], strides = [1, 1]} : vector<64x1024xf32> to vector<64x128xf32>
    %33 = arith.addf %31, %32 : vector<64x128xf32>
    %34 = vector.extract_strided_slice %22 {offsets = [0, 768], sizes = [64, 128], strides = [1, 1]} : vector<64x1024xf32> to vector<64x128xf32>
    %35 = arith.addf %33, %34 : vector<64x128xf32>
    %36 = vector.extract_strided_slice %22 {offsets = [0, 896], sizes = [64, 128], strides = [1, 1]} : vector<64x1024xf32> to vector<64x128xf32>
    %37 = arith.addf %35, %36 : vector<64x128xf32>
    %38 = vector.extract_strided_slice %37 {offsets = [0, 0], sizes = [8, 128], strides = [1, 1]} : vector<64x128xf32> to vector<8x128xf32>
    %39 = vector.extract_strided_slice %37 {offsets = [8, 0], sizes = [8, 128], strides = [1, 1]} : vector<64x128xf32> to vector<8x128xf32>
    %40 = arith.addf %38, %39 : vector<8x128xf32>
    %41 = vector.extract_strided_slice %37 {offsets = [16, 0], sizes = [8, 128], strides = [1, 1]} : vector<64x128xf32> to vector<8x128xf32>
    %42 = arith.addf %40, %41 : vector<8x128xf32>
    %43 = vector.extract_strided_slice %37 {offsets = [24, 0], sizes = [8, 128], strides = [1, 1]} : vector<64x128xf32> to vector<8x128xf32>
    %44 = arith.addf %42, %43 : vector<8x128xf32>
    %45 = vector.extract_strided_slice %37 {offsets = [32, 0], sizes = [8, 128], strides = [1, 1]} : vector<64x128xf32> to vector<8x128xf32>
    %46 = arith.addf %44, %45 : vector<8x128xf32>
    %47 = vector.extract_strided_slice %37 {offsets = [40, 0], sizes = [8, 128], strides = [1, 1]} : vector<64x128xf32> to vector<8x128xf32>
    %48 = arith.addf %46, %47 : vector<8x128xf32>
    %49 = vector.extract_strided_slice %37 {offsets = [48, 0], sizes = [8, 128], strides = [1, 1]} : vector<64x128xf32> to vector<8x128xf32>
    %50 = arith.addf %48, %49 : vector<8x128xf32>
    %51 = vector.extract_strided_slice %37 {offsets = [56, 0], sizes = [8, 128], strides = [1, 1]} : vector<64x128xf32> to vector<8x128xf32>
    %52 = arith.addf %50, %51 : vector<8x128xf32>
    %c0_11 = arith.constant 0 : index
    %c0_12 = arith.constant 0 : index
    %53 = vector.load %arg6[%c0_11, %c0_12] : memref<8x128xf32, #tpu.memory_space<vmem>>, vector<8x128xf32>
    %54 = arith.addf %53, %52 : vector<8x128xf32>
    %c0_13 = arith.constant 0 : index
    %c0_14 = arith.constant 0 : index
    %55 = vector.load %arg6[%c0_13, %c0_14] : memref<8x128xf32, #tpu.memory_space<vmem>>, vector<8x128xf32>
    tpu.vector_store %arg6[%c0_13, %c0_14], %54 {strides = array<i32>} : memref<8x128xf32, #tpu.memory_space<vmem>>, vector<8x128xf32>,
    %c0_i32_15 = arith.constant 0 : i32
    %56 = arith.cmpi eq, %arg1, %c0_i32_15 : i32
    %57 = arith.extui %56 : i1 to i32
    %c0_i32_16 = arith.constant 0 : i32
    %58 = arith.cmpi ne, %57, %c0_i32_16 : i32
    scf.if %58 {
      %c0_17 = arith.constant 0 : index
      %c0_18 = arith.constant 0 : index
      %59 = vector.load %arg6[%c0_17, %c0_18] : memref<8x128xf32, #tpu.memory_space<vmem>>, vector<8x128xf32>
      %c0_19 = arith.constant 0 : index
      %c0_20 = arith.constant 0 : index
      %60 = vector.load %arg5[%c0_19, %c0_20] : memref<8x128xf32, #tpu.memory_space<vmem>>, vector<8x128xf32>
      tpu.vector_store %arg5[%c0_19, %c0_20], %59 {strides = array<i32>} : memref<8x128xf32, #tpu.memory_space<vmem>>, vector<8x128xf32>,
    } else {
    }
    return
  }
  func.func @transform_0(%arg0: i32, %arg1: i32) -> (i32, i32) {
    %c0_i32 = arith.constant 0 : i32
    return %arg0, %arg1 : i32, i32
  }
  func.func @transform_1(%arg0: i32, %arg1: i32) -> (i32, i32) {
    %c0_i32 = arith.constant 0 : i32
    %c0_i32_0 = arith.constant 0 : i32
    return %arg0, %c0_i32 : i32, i32
  }
  func.func @transform_2(%arg0: i32, %arg1: i32) -> (i32, i32) {
    %c0_i32 = arith.constant 0 : i32
    %c0_i32_0 = arith.constant 0 : i32
    return %c0_i32, %arg1 : i32, i32
  }
  func.func @transform_3(%arg0: i32, %arg1: i32) -> (i32, i32) {
    %c0_i32 = arith.constant 0 : i32
    %c0_i32_0 = arith.constant 0 : i32
    return %arg0, %c0_i32 : i32, i32
  }
}

</mosaic_0001>

<llo_original>
// kernel: tpu_custom_call.1
$region0: #{tpu_custom_call.1}
  #allocation0 [shape = 'u32[]', space=smem, size = 0x4, offset = 0x4, fixed_abs, tag = 'smem constant byte address 0x4 - core index']
  #allocation1 [shape = 'u32[144,128]{1,0:T(1,128)}', space=vmem, size = 0x12000, scoped, tag = 'internal scratch']
  #allocation2 [shape = 'f32[8,128]{1,0:T(8,128)}', space=vmem, size = 0x1000, scoped, tag = 'scratch operand']
  %s0 = inlined_call_operand.hbm [shape: bf16[64,1024], index: 0, kind: input, shape index: {}]
  %s1 = inlined_call_operand.vmem [shape: f32[64,8], index: 1, kind: input, shape index: {}]
  %s2 = inlined_call_operand.vmem [shape: f32[8,1024], index: 2, kind: input, shape index: {}]
  %s3 = inlined_call_operand.hbm [shape: f32[8,128], index: 3, kind: output, shape index: {}]
  %s4 = sld [smem:[#allocation0]]
  $region34: #{tpu_custom_call.1} parent=0
    _
  %s6 = ssub.s32 1, %s4
  %s7 = scalar_select 0, %s6, %s4
  $region1: #{tpu_custom_call.1} parent=0
    #allocation3 [shape = 'u8[131072]{0}', space=vmem, size = 0x20000, scoped, tag = 'input window, operand 0, single buffered']
    #allocation4 [shape = 's32[1]{0}', space=sflag, size = 0x4, scoped, tag = 'scoped memory for tpu_custom_call.1']
    #allocation5 [shape = 's32[1]{0}', space=sflag, size = 0x4, scoped, tag = 'scoped memory for tpu_custom_call.1']
    #allocation6 [shape = 'u8[4096]{0}', space=vmem, size = 0x1000, scoped, tag = 'output window, operand 0, single buffered']
    %8 = vsyncpa [#allocation4], 0
    %9 = vsyncpa [#allocation5], 0
    // Predicated region
    $region2: #{tpu_custom_call.1} parent=1 // pred_check
      _
    $region3: #{tpu_custom_call.1} parent=1 // pred_check_branch
      %11 = sbr.rel (0) target = $region5
    $region4: #{tpu_custom_call.1} parent=1 // pred_region
      %s13 = ssub.s32 4096, 4096
      %14 = vsyncadd [#allocation4], %s13
      %s15 = sshll.u32 [#allocation3], 4
      %s16 = int_to_ptr.vmem [resolvable:$true] %s15
      %21 = dma.hbm_to_vmem [thread:$0]  %s0, 4096, %s16, [#allocation4], 512, 512, 32
    $region5: #{tpu_custom_call.1} parent=1 // pred_fallthru
      _
    // Predicated region
    $region6: #{tpu_custom_call.1} parent=1 // pred_check
      _
    $region7: #{tpu_custom_call.1} parent=1 // pred_check_branch
      %23 = sbr.rel (0) target = $region9
    $region8: #{tpu_custom_call.1} parent=1 // pred_region
      _
    $region9: #{tpu_custom_call.1} parent=1 // pred_fallthru
      _
    // Predicated region
    $region10: #{tpu_custom_call.1} parent=1 // pred_check
      _
    $region11: #{tpu_custom_call.1} parent=1 // pred_check_branch
      %25 = sbr.rel (0) target = $region13
    $region12: #{tpu_custom_call.1} parent=1 // pred_region
      _
    $region13: #{tpu_custom_call.1} parent=1 // pred_fallthru
      _
    // Predicated region
    $region14: #{tpu_custom_call.1} parent=1 // pred_check
      _
    $region15: #{tpu_custom_call.1} parent=1 // pred_check_branch
      %27 = sbr.rel (0) target = $region17
    $region16: #{tpu_custom_call.1} parent=1 // pred_region
      %28 = dma.done [#allocation4], 4096
    $region17: #{tpu_custom_call.1} parent=1 // pred_fallthru
      _
    %p29 = scmp.eq.s32.totalorder 0, 0
    // Predicated region
    $region18: #{tpu_custom_call.1} parent=1 // pred_check
      %p30 = pneg %p29
    $region19: #{tpu_custom_call.1} parent=1 // pred_check_branch
      %32 = sbr.rel (%p30) target = $region21
    $region20: #{tpu_custom_call.1} parent=1 // pred_region
      %33 = vst [vmem:[#allocation2] sm:$0xff] 0.0
    $region21: #{tpu_custom_call.1} parent=1 // pred_fallthru
      _
    %v34 = vld [vmem:[%s1] sm:$0xff]
    %v35 = vld [vmem:[%s1 + $0x8] sm:$0xff]
    %v36 = vld [vmem:[%s1 + $0x10] sm:$0xff]
    %v37 = vld [vmem:[%s1 + $0x18] sm:$0xff]
    %v38 = vld [vmem:[%s1 + $0x20] sm:$0xff]
    %v39 = vld [vmem:[%s1 + $0x28] sm:$0xff]
    %v40 = vld [vmem:[%s1 + $0x30] sm:$0xff]
    %v41 = vld [vmem:[%s1 + $0x38] sm:$0xff]
    %v42 = vld [vmem:[%s2] sm:$0xff]
    %v43 = vld [vmem:[%s2 + $0x8] sm:$0xff]
    %v44 = vld [vmem:[%s2 + $0x10] sm:$0xff]
    %v45 = vld [vmem:[%s2 + $0x18] sm:$0xff]
    %v46 = vld [vmem:[%s2 + $0x20] sm:$0xff]
    %v47 = vld [vmem:[%s2 + $0x28] sm:$0xff]
    %v48 = vld [vmem:[%s2 + $0x30] sm:$0xff]
    %v49 = vld [vmem:[%s2 + $0x38] sm:$0xff]
    %vm50 = vcmask 64512
    %v52 = vsel %vm50, %v34, 0
    %v55 = vsel %vm50, %v35, 0
    %v58 = vsel %vm50, %v36, 0
    %v61 = vsel %vm50, %v37, 0
    %v64 = vsel %vm50, %v38, 0
    %v67 = vsel %vm50, %v39, 0
    %v70 = vsel %vm50, %v40, 0
    %v73 = vsel %vm50, %v41, 0
    %75 = vmatprep.subr.mxu0 0.0
    %76 = vmatpush1.msra.mxu0 0.0
    %77 = vmatprep.subr.mxu0 0.0
    %78 = vmatpush1.msra.mxu0 0.0
    %79 = vmatprep.subr.mxu0 0.0
    %80 = vmatpush1.msra.mxu0 0.0
    %81 = vmatprep.subr.mxu0 0.0
    %82 = vmatpush1.msra.mxu0 0.0
    %83 = vmatprep.subr.mxu0 0.0
    %84 = vmatpush1.msra.mxu0 0.0
    %85 = vmatprep.subr.mxu0 0.0
    %86 = vmatpush1.msra.mxu0 0.0
    %87 = vmatprep.subr.mxu0 0.0
    %88 = vmatpush1.msra.mxu0 0.0
    %89 = vmatprep.subr.mxu0 0.0
    %90 = vmatpush1.msra.mxu0 0.0
    %91 = vmatprep.subr.mxu0 0.0
    %92 = vmatpush1.msra.mxu0 0.0
    %93 = vmatprep.subr.mxu0 0.0
    %94 = vmatpush1.msra.mxu0 0.0
    %95 = vmatprep.subr.mxu0 0.0
    %96 = vmatpush1.msra.mxu0 0.0
    %97 = vmatprep.subr.mxu0 0.0
    %98 = vmatpush1.msra.mxu0 0.0
    %99 = vmatprep.subr.mxu0 0.0
    %100 = vmatpush1.msra.mxu0 0.0
    %101 = vmatprep.subr.mxu0 0.0
    %102 = vmatpush1.msra.mxu0 0.0
    %103 = vmatprep.subr.mxu0 0.0
    %104 = vmatpush1.msra.mxu0 0.0
    %105 = vmatprep.subr.mxu0 %v43
    %106 = vmatpush1.msra.mxu0 %v42
    %107 = vmatprep.subr.mxu0 0.0
    %108 = vmatpush2.msra.mxu0 0.0
    %109 = vmatprep.subr.mxu0 0.0
    %110 = vmatpush2.msra.mxu0 0.0
    %111 = vmatprep.subr.mxu0 0.0
    %112 = vmatpush2.msra.mxu0 0.0
    %113 = vmatprep.subr.mxu0 0.0
    %114 = vmatpush2.msra.mxu0 0.0
    %115 = vmatprep.subr.mxu0 0.0
    %116 = vmatpush2.msra.mxu0 0.0
    %117 = vmatprep.subr.mxu0 0.0
    %118 = vmatpush2.msra.mxu0 0.0
    %119 = vmatprep.subr.mxu0 0.0
    %120 = vmatpush2.msra.mxu0 0.0
    %121 = vmatprep.subr.mxu0 0.0
    %122 = vmatpush2.msra.mxu0 0.0
    %123 = vmatprep.subr.mxu0 0.0
    %124 = vmatpush2.msra.mxu0 0.0
    %125 = vmatprep.subr.mxu0 0.0
    %126 = vmatpush2.msra.mxu0 0.0
    %127 = vmatprep.subr.mxu0 0.0
    %128 = vmatpush2.msra.mxu0 0.0
    %129 = vmatprep.subr.mxu0 0.0
    %130 = vmatpush2.msra.mxu0 0.0
    %131 = vmatprep.subr.mxu0 0.0
    %132 = vmatpush2.msra.mxu0 0.0
    %133 = vmatprep.subr.mxu0 0.0
    %134 = vmatpush2.msra.mxu0 0.0
    %135 = vmatprep.subr.mxu0 0.0
    %136 = vmatpush2.msra.mxu0 0.0
    %137 = vmatprep.subr.mxu0 0.0
    %138 = vmatpush2.msra.mxu0 0.0
    %139 = vmatprep.mubr.f32.mxu0 0.0
    %140 = vmatmul.mubr.f32.gmra.mxu0 %v52
    %v141 = vpop.f32.mrf.mxu0
    %v142 = vadd.f32 0.0, %v141
    %v143 = vpop.f32.mrf.mxu0
    %v144 = vadd.f32 0.0, %v143
    %145 = vmatprep.mubr.f32.mxu0 0.0
    %146 = vmatmul.mubr.f32.gmra.mxu0 %v55
    %v147 = vpop.f32.mrf.mxu0
    %v148 = vadd.f32 0.0, %v147
    %v149 = vpop.f32.mrf.mxu0
    %v150 = vadd.f32 0.0, %v149
    %151 = vmatprep.mubr.f32.mxu0 0.0
    %152 = vmatmul.mubr.f32.gmra.mxu0 %v58
    %v153 = vpop.f32.mrf.mxu0
    %v154 = vadd.f32 0.0, %v153
    %v155 = vpop.f32.mrf.mxu0
    %v156 = vadd.f32 0.0, %v155
    %157 = vmatprep.mubr.f32.mxu0 0.0
    %158 = vmatmul.mubr.f32.gmra.mxu0 %v61
    %v159 = vpop.f32.mrf.mxu0
    %v160 = vadd.f32 0.0, %v159
    %v161 = vpop.f32.mrf.mxu0
    %v162 = vadd.f32 0.0, %v161
    %163 = vmatprep.mubr.f32.mxu0 0.0
    %164 = vmatmul.mubr.f32.gmra.mxu0 %v64
    %v165 = vpop.f32.mrf.mxu0
    %v166 = vadd.f32 0.0, %v165
    %v167 = vpop.f32.mrf.mxu0
    %v168 = vadd.f32 0.0, %v167
    %169 = vmatprep.mubr.f32.mxu0 0.0
    %170 = vmatmul.mubr.f32.gmra.mxu0 %v67
    %v171 = vpop.f32.mrf.mxu0
    %v172 = vadd.f32 0.0, %v171
    %v173 = vpop.f32.mrf.mxu0
    %v174 = vadd.f32 0.0, %v173
    %175 = vmatprep.mubr.f32.mxu0 0.0
    %176 = vmatmul.mubr.f32.gmra.mxu0 %v70
    %v177 = vpop.f32.mrf.mxu0
    %v178 = vadd.f32 0.0, %v177
    %v179 = vpop.f32.mrf.mxu0
    %v180 = vadd.f32 0.0, %v179
    %181 = vmatprep.mubr.f32.mxu0 0.0
    %182 = vmatmul.mubr.f32.gmra.mxu0 %v73
    %v183 = vpop.f32.mrf.mxu0
    %v184 = vadd.f32 0.0, %v183
    %v185 = vpop.f32.mrf.mxu0
    %v186 = vadd.f32 0.0, %v185
    %187 = vdwg.mxu0
    %188 = vmatprep.subr.mxu0 0.0
    %189 = vmatpush1.msra.mxu0 0.0
    %190 = vmatprep.subr.mxu0 0.0
    %191 = vmatpush1.msra.mxu0 0.0
    %192 = vmatprep.subr.mxu0 0.0
    %193 = vmatpush1.msra.mxu0 0.0
    %194 = vmatprep.subr.mxu0 0.0
    %195 = vmatpush1.msra.mxu0 0.0
    %196 = vmatprep.subr.mxu0 0.0
    %197 = vmatpush1.msra.mxu0 0.0
    %198 = vmatprep.subr.mxu0 0.0
    %199 = vmatpush1.msra.mxu0 0.0
    %200 = vmatprep.subr.mxu0 0.0
    %201 = vmatpush1.msra.mxu0 0.0
    %202 = vmatprep.subr.mxu0 0.0
    %203 = vmatpush1.msra.mxu0 0.0
    %204 = vmatprep.subr.mxu0 0.0
    %205 = vmatpush1.msra.mxu0 0.0
    %206 = vmatprep.subr.mxu0 0.0
    %207 = vmatpush1.msra.mxu0 0.0
    %208 = vmatprep.subr.mxu0 0.0
    %209 = vmatpush1.msra.mxu0 0.0
    %210 = vmatprep.subr.mxu0 0.0
    %211 = vmatpush1.msra.mxu0 0.0
    %212 = vmatprep.subr.mxu0 0.0
    %213 = vmatpush1.msra.mxu0 0.0
    %214 = vmatprep.subr.mxu0 0.0
    %215 = vmatpush1.msra.mxu0 0.0
    %216 = vmatprep.subr.mxu0 0.0
    %217 = vmatpush1.msra.mxu0 0.0
    %218 = vmatprep.subr.mxu0 %v45
    %219 = vmatpush1.msra.mxu0 %v44
    %220 = vmatprep.subr.mxu0 0.0
    %221 = vmatpush2.msra.mxu0 0.0
    %222 = vmatprep.subr.mxu0 0.0
    %223 = vmatpush2.msra.mxu0 0.0
    %224 = vmatprep.subr.mxu0 0.0
    %225 = vmatpush2.msra.mxu0 0.0
    %226 = vmatprep.subr.mxu0 0.0
    %227 = vmatpush2.msra.mxu0 0.0
    %228 = vmatprep.subr.mxu0 0.0
    %229 = vmatpush2.msra.mxu0 0.0
    %230 = vmatprep.subr.mxu0 0.0
    %231 = vmatpush2.msra.mxu0 0.0
    %232 = vmatprep.subr.mxu0 0.0
    %233 = vmatpush2.msra.mxu0 0.0
    %234 = vmatprep.subr.mxu0 0.0
    %235 = vmatpush2.msra.mxu0 0.0
    %236 = vmatprep.subr.mxu0 0.0
    %237 = vmatpush2.msra.mxu0 0.0
    %238 = vmatprep.subr.mxu0 0.0
    %239 = vmatpush2.msra.mxu0 0.0
    %240 = vmatprep.subr.mxu0 0.0
    %241 = vmatpush2.msra.mxu0 0.0
    %242 = vmatprep.subr.mxu0 0.0
    %243 = vmatpush2.msra.mxu0 0.0
    %244 = vmatprep.subr.mxu0 0.0
    %245 = vmatpush2.msra.mxu0 0.0
    %246 = vmatprep.subr.mxu0 0.0
    %247 = vmatpush2.msra.mxu0 0.0
    %248 = vmatprep.subr.mxu0 0.0
    %249 = vmatpush2.msra.mxu0 0.0
    %250 = vmatprep.subr.mxu0 0.0
    %251 = vmatpush2.msra.mxu0 0.0
    %252 = vmatprep.mubr.f32.mxu0 0.0
    %253 = vmatmul.mubr.f32.gmra.mxu0 %v52
    %v254 = vpop.f32.mrf.mxu0
    %v255 = vadd.f32 0.0, %v254
    %v256 = vpop.f32.mrf.mxu0
    %v257 = vadd.f32 0.0, %v256
    %258 = vmatprep.mubr.f32.mxu0 0.0
    %259 = vmatmul.mubr.f32.gmra.mxu0 %v55
    %v260 = vpop.f32.mrf.mxu0
    %v261 = vadd.f32 0.0, %v260
    %v262 = vpop.f32.mrf.mxu0
    %v263 = vadd.f32 0.0, %v262
    %264 = vmatprep.mubr.f32.mxu0 0.0
    %265 = vmatmul.mubr.f32.gmra.mxu0 %v58
    %v266 = vpop.f32.mrf.mxu0
    %v267 = vadd.f32 0.0, %v266
    %v268 = vpop.f32.mrf.mxu0
    %v269 = vadd.f32 0.0, %v268
    %270 = vmatprep.mubr.f32.mxu0 0.0
    %271 = vmatmul.mubr.f32.gmra.mxu0 %v61
    %v272 = vpop.f32.mrf.mxu0
    %v273 = vadd.f32 0.0, %v272
    %v274 = vpop.f32.mrf.mxu0
    %v275 = vadd.f32 0.0, %v274
    %276 = vmatprep.mubr.f32.mxu0 0.0
    %277 = vmatmul.mubr.f32.gmra.mxu0 %v64
    %v278 = vpop.f32.mrf.mxu0
    %v279 = vadd.f32 0.0, %v278
    %v280 = vpop.f32.mrf.mxu0
    %v281 = vadd.f32 0.0, %v280
    %282 = vmatprep.mubr.f32.mxu0 0.0
    %283 = vmatmul.mubr.f32.gmra.mxu0 %v67
    %v284 = vpop.f32.mrf.mxu0
    %v285 = vadd.f32 0.0, %v284
    %v286 = vpop.f32.mrf.mxu0
    %v287 = vadd.f32 0.0, %v286
    %288 = vmatprep.mubr.f32.mxu0 0.0
    %289 = vmatmul.mubr.f32.gmra.mxu0 %v70
    %v290 = vpop.f32.mrf.mxu0
    %v291 = vadd.f32 0.0, %v290
    %v292 = vpop.f32.mrf.mxu0
    %v293 = vadd.f32 0.0, %v292
    %294 = vmatprep.mubr.f32.mxu0 0.0
    %295 = vmatmul.mubr.f32.gmra.mxu0 %v73
    %v296 = vpop.f32.mrf.mxu0
    %v297 = vadd.f32 0.0, %v296
    %v298 = vpop.f32.mrf.mxu0
    %v299 = vadd.f32 0.0, %v298
    %300 = vdwg.mxu0
    %301 = vmatprep.subr.mxu0 0.0
    %302 = vmatpush1.msra.mxu0 0.0
    %303 = vmatprep.subr.mxu0 0.0
    %304 = vmatpush1.msra.mxu0 0.0
    %305 = vmatprep.subr.mxu0 0.0
    %306 = vmatpush1.msra.mxu0 0.0
    %307 = vmatprep.subr.mxu0 0.0
    %308 = vmatpush1.msra.mxu0 0.0
    %309 = vmatprep.subr.mxu0 0.0
    %310 = vmatpush1.msra.mxu0 0.0
    %311 = vmatprep.subr.mxu0 0.0
    %312 = vmatpush1.msra.mxu0 0.0
    %313 = vmatprep.subr.mxu0 0.0
    %314 = vmatpush1.msra.mxu0 0.0
    %315 = vmatprep.subr.mxu0 0.0
    %316 = vmatpush1.msra.mxu0 0.0
    %317 = vmatprep.subr.mxu0 0.0
    %318 = vmatpush1.msra.mxu0 0.0
    %319 = vmatprep.subr.mxu0 0.0
    %320 = vmatpush1.msra.mxu0 0.0
    %321 = vmatprep.subr.mxu0 0.0
    %322 = vmatpush1.msra.mxu0 0.0
    %323 = vmatprep.subr.mxu0 0.0
    %324 = vmatpush1.msra.mxu0 0.0
    %325 = vmatprep.subr.mxu0 0.0
    %326 = vmatpush1.msra.mxu0 0.0
    %327 = vmatprep.subr.mxu0 0.0
    %328 = vmatpush1.msra.mxu0 0.0
    %329 = vmatprep.subr.mxu0 0.0
    %330 = vmatpush1.msra.mxu0 0.0
    %331 = vmatprep.subr.mxu0 %v47
    %332 = vmatpush1.msra.mxu0 %v46
    %333 = vmatprep.subr.mxu0 0.0
    %334 = vmatpush2.msra.mxu0 0.0
    %335 = vmatprep.subr.mxu0 0.0
    %336 = vmatpush2.msra.mxu0 0.0
    %337 = vmatprep.subr.mxu0 0.0
    %338 = vmatpush2.msra.mxu0 0.0
    %339 = vmatprep.subr.mxu0 0.0
    %340 = vmatpush2.msra.mxu0 0.0
    %341 = vmatprep.subr.mxu0 0.0
    %342 = vmatpush2.msra.mxu0 0.0
    %343 = vmatprep.subr.mxu0 0.0
    %344 = vmatpush2.msra.mxu0 0.0
    %345 = vmatprep.subr.mxu0 0.0
    %346 = vmatpush2.msra.mxu0 0.0
    %347 = vmatprep.subr.mxu0 0.0
    %348 = vmatpush2.msra.mxu0 0.0
    %349 = vmatprep.subr.mxu0 0.0
    %350 = vmatpush2.msra.mxu0 0.0
    %351 = vmatprep.subr.mxu0 0.0
    %352 = vmatpush2.msra.mxu0 0.0
    %353 = vmatprep.subr.mxu0 0.0
    %354 = vmatpush2.msra.mxu0 0.0
    %355 = vmatprep.subr.mxu0 0.0
    %356 = vmatpush2.msra.mxu0 0.0
    %357 = vmatprep.subr.mxu0 0.0
    %358 = vmatpush2.msra.mxu0 0.0
    %359 = vmatprep.subr.mxu0 0.0
    %360 = vmatpush2.msra.mxu0 0.0
    %361 = vmatprep.subr.mxu0 0.0
    %362 = vmatpush2.msra.mxu0 0.0
    %363 = vmatprep.subr.mxu0 0.0
    %364 = vmatpush2.msra.mxu0 0.0
    %365 = vmatprep.mubr.f32.mxu0 0.0
    %366 = vmatmul.mubr.f32.gmra.mxu0 %v52
    %v367 = vpop.f32.mrf.mxu0
    %v368 = vadd.f32 0.0, %v367
    %v369 = vpop.f32.mrf.mxu0
    %v370 = vadd.f32 0.0, %v369
    %371 = vmatprep.mubr.f32.mxu0 0.0
    %372 = vmatmul.mubr.f32.gmra.mxu0 %v55
    %v373 = vpop.f32.mrf.mxu0
    %v374 = vadd.f32 0.0, %v373
    %v375 = vpop.f32.mrf.mxu0
    %v376 = vadd.f32 0.0, %v375
    %377 = vmatprep.mubr.f32.mxu0 0.0
    %378 = vmatmul.mubr.f32.gmra.mxu0 %v58
    %v379 = vpop.f32.mrf.mxu0
    %v380 = vadd.f32 0.0, %v379
    %v381 = vpop.f32.mrf.mxu0
    %v382 = vadd.f32 0.0, %v381
    %383 = vmatprep.mubr.f32.mxu0 0.0
    %384 = vmatmul.mubr.f32.gmra.mxu0 %v61
    %v385 = vpop.f32.mrf.mxu0
    %v386 = vadd.f32 0.0, %v385
    %v387 = vpop.f32.mrf.mxu0
    %v388 = vadd.f32 0.0, %v387
    %389 = vmatprep.mubr.f32.mxu0 0.0
    %390 = vmatmul.mubr.f32.gmra.mxu0 %v64
    %v391 = vpop.f32.mrf.mxu0
    %v392 = vadd.f32 0.0, %v391
    %v393 = vpop.f32.mrf.mxu0
    %v394 = vadd.f32 0.0, %v393
    %395 = vmatprep.mubr.f32.mxu0 0.0
    %396 = vmatmul.mubr.f32.gmra.mxu0 %v67
    %v397 = vpop.f32.mrf.mxu0
    %v398 = vadd.f32 0.0, %v397
    %v399 = vpop.f32.mrf.mxu0
    %v400 = vadd.f32 0.0, %v399
    %401 = vmatprep.mubr.f32.mxu0 0.0
    %402 = vmatmul.mubr.f32.gmra.mxu0 %v70
    %v403 = vpop.f32.mrf.mxu0
    %v404 = vadd.f32 0.0, %v403
    %v405 = vpop.f32.mrf.mxu0
    %v406 = vadd.f32 0.0, %v405
    %407 = vmatprep.mubr.f32.mxu0 0.0
    %408 = vmatmul.mubr.f32.gmra.mxu0 %v73
    %v409 = vpop.f32.mrf.mxu0
    %v410 = vadd.f32 0.0, %v409
    %v411 = vpop.f32.mrf.mxu0
    %v412 = vadd.f32 0.0, %v411
    %413 = vdwg.mxu0
    %414 = vmatprep.subr.mxu0 0.0
    %415 = vmatpush1.msra.mxu0 0.0
    %416 = vmatprep.subr.mxu0 0.0
    %417 = vmatpush1.msra.mxu0 0.0
    %418 = vmatprep.subr.mxu0 0.0
    %419 = vmatpush1.msra.mxu0 0.0
    %420 = vmatprep.subr.mxu0 0.0
    %421 = vmatpush1.msra.mxu0 0.0
    %422 = vmatprep.subr.mxu0 0.0
    %423 = vmatpush1.msra.mxu0 0.0
    %424 = vmatprep.subr.mxu0 0.0
    %425 = vmatpush1.msra.mxu0 0.0
    %426 = vmatprep.subr.mxu0 0.0
    %427 = vmatpush1.msra.mxu0 0.0
    %428 = vmatprep.subr.mxu0 0.0
    %429 = vmatpush1.msra.mxu0 0.0
    %430 = vmatprep.subr.mxu0 0.0
    %431 = vmatpush1.msra.mxu0 0.0
    %432 = vmatprep.subr.mxu0 0.0
    %433 = vmatpush1.msra.mxu0 0.0
    %434 = vmatprep.subr.mxu0 0.0
    %435 = vmatpush1.msra.mxu0 0.0
    %436 = vmatprep.subr.mxu0 0.0
    %437 = vmatpush1.msra.mxu0 0.0
    %438 = vmatprep.subr.mxu0 0.0
    %439 = vmatpush1.msra.mxu0 0.0
    %440 = vmatprep.subr.mxu0 0.0
    %441 = vmatpush1.msra.mxu0 0.0
    %442 = vmatprep.subr.mxu0 0.0
    %443 = vmatpush1.msra.mxu0 0.0
    %444 = vmatprep.subr.mxu0 %v49
    %445 = vmatpush1.msra.mxu0 %v48
    %446 = vmatprep.subr.mxu0 0.0
    %447 = vmatpush2.msra.mxu0 0.0
    %448 = vmatprep.subr.mxu0 0.0
    %449 = vmatpush2.msra.mxu0 0.0
    %450 = vmatprep.subr.mxu0 0.0
    %451 = vmatpush2.msra.mxu0 0.0
    %452 = vmatprep.subr.mxu0 0.0
    %453 = vmatpush2.msra.mxu0 0.0
    %454 = vmatprep.subr.mxu0 0.0
    %455 = vmatpush2.msra.mxu0 0.0
    %456 = vmatprep.subr.mxu0 0.0
    %457 = vmatpush2.msra.mxu0 0.0
    %458 = vmatprep.subr.mxu0 0.0
    %459 = vmatpush2.msra.mxu0 0.0
    %460 = vmatprep.subr.mxu0 0.0
    %461 = vmatpush2.msra.mxu0 0.0
    %462 = vmatprep.subr.mxu0 0.0
    %463 = vmatpush2.msra.mxu0 0.0
    %464 = vmatprep.subr.mxu0 0.0
    %465 = vmatpush2.msra.mxu0 0.0
    %466 = vmatprep.subr.mxu0 0.0
    %467 = vmatpush2.msra.mxu0 0.0
    %468 = vmatprep.subr.mxu0 0.0
    %469 = vmatpush2.msra.mxu0 0.0
    %470 = vmatprep.subr.mxu0 0.0
    %471 = vmatpush2.msra.mxu0 0.0
    %472 = vmatprep.subr.mxu0 0.0
    %473 = vmatpush2.msra.mxu0 0.0
    %474 = vmatprep.subr.mxu0 0.0
    %475 = vmatpush2.msra.mxu0 0.0
    %476 = vmatprep.subr.mxu0 0.0
    %477 = vmatpush2.msra.mxu0 0.0
    %478 = vmatprep.mubr.f32.mxu0 0.0
    %479 = vmatmul.mubr.f32.gmra.mxu0 %v52
    %v480 = vpop.f32.mrf.mxu0
    %v481 = vadd.f32 0.0, %v480
    %v482 = vpop.f32.mrf.mxu0
    %v483 = vadd.f32 0.0, %v482
    %484 = vmatprep.mubr.f32.mxu0 0.0
    %485 = vmatmul.mubr.f32.gmra.mxu0 %v55
    %v486 = vpop.f32.mrf.mxu0
    %v487 = vadd.f32 0.0, %v486
    %v488 = vpop.f32.mrf.mxu0
    %v489 = vadd.f32 0.0, %v488
    %490 = vmatprep.mubr.f32.mxu0 0.0
    %491 = vmatmul.mubr.f32.gmra.mxu0 %v58
    %v492 = vpop.f32.mrf.mxu0
    %v493 = vadd.f32 0.0, %v492
    %v494 = vpop.f32.mrf.mxu0
    %v495 = vadd.f32 0.0, %v494
    %496 = vmatprep.mubr.f32.mxu0 0.0
    %497 = vmatmul.mubr.f32.gmra.mxu0 %v61
    %v498 = vpop.f32.mrf.mxu0
    %v499 = vadd.f32 0.0, %v498
    %v500 = vpop.f32.mrf.mxu0
    %v501 = vadd.f32 0.0, %v500
    %502 = vmatprep.mubr.f32.mxu0 0.0
    %503 = vmatmul.mubr.f32.gmra.mxu0 %v64
    %v504 = vpop.f32.mrf.mxu0
    %v505 = vadd.f32 0.0, %v504
    %v506 = vpop.f32.mrf.mxu0
    %v507 = vadd.f32 0.0, %v506
    %508 = vmatprep.mubr.f32.mxu0 0.0
    %509 = vmatmul.mubr.f32.gmra.mxu0 %v67
    %v510 = vpop.f32.mrf.mxu0
    %v511 = vadd.f32 0.0, %v510
    %v512 = vpop.f32.mrf.mxu0
    %v513 = vadd.f32 0.0, %v512
    %514 = vmatprep.mubr.f32.mxu0 0.0
    %515 = vmatmul.mubr.f32.gmra.mxu0 %v70
    %v516 = vpop.f32.mrf.mxu0
    %v517 = vadd.f32 0.0, %v516
    %v518 = vpop.f32.mrf.mxu0
    %v519 = vadd.f32 0.0, %v518
    %520 = vmatprep.mubr.f32.mxu0 0.0
    %521 = vmatmul.mubr.f32.gmra.mxu0 %v73
    %v522 = vpop.f32.mrf.mxu0
    %v523 = vadd.f32 0.0, %v522
    %v524 = vpop.f32.mrf.mxu0
    %v525 = vadd.f32 0.0, %v524
    %526 = vdwg.mxu0
    %v527 = vld [vmem:[#allocation3] sm:$0xff]
    %v528 = vld [vmem:[#allocation3 + $0x8] sm:$0xff]
    %v529 = vld [vmem:[#allocation3 + $0x10] sm:$0xff]
    %v530 = vld [vmem:[#allocation3 + $0x18] sm:$0xff]
    %v531 = vld [vmem:[#allocation3 + $0x20] sm:$0xff]
    %v532 = vld [vmem:[#allocation3 + $0x28] sm:$0xff]
    %v533 = vld [vmem:[#allocation3 + $0x30] sm:$0xff]
    %v534 = vld [vmem:[#allocation3 + $0x38] sm:$0xff]
    %v535 = vld [vmem:[#allocation3 + $0x40] sm:$0xff]
    %v536 = vld [vmem:[#allocation3 + $0x48] sm:$0xff]
    %v537 = vld [vmem:[#allocation3 + $0x50] sm:$0xff]
    %v538 = vld [vmem:[#allocation3 + $0x58] sm:$0xff]
    %v539 = vld [vmem:[#allocation3 + $0x60] sm:$0xff]
    %v540 = vld [vmem:[#allocation3 + $0x68] sm:$0xff]
    %v541 = vld [vmem:[#allocation3 + $0x70] sm:$0xff]
    %v542 = vld [vmem:[#allocation3 + $0x78] sm:$0xff]
    %v543 = vld [vmem:[#allocation3 + $0x80] sm:$0xff]
    %v544 = vld [vmem:[#allocation3 + $0x88] sm:$0xff]
    %v545 = vld [vmem:[#allocation3 + $0x90] sm:$0xff]
    %v546 = vld [vmem:[#allocation3 + $0x98] sm:$0xff]
    %v547 = vld [vmem:[#allocation3 + $0xa0] sm:$0xff]
    %v548 = vld [vmem:[#allocation3 + $0xa8] sm:$0xff]
    %v549 = vld [vmem:[#allocation3 + $0xb0] sm:$0xff]
    %v550 = vld [vmem:[#allocation3 + $0xb8] sm:$0xff]
    %v551 = vld [vmem:[#allocation3 + $0xc0] sm:$0xff]
    %v552 = vld [vmem:[#allocation3 + $0xc8] sm:$0xff]
    %v553 = vld [vmem:[#allocation3 + $0xd0] sm:$0xff]
    %v554 = vld [vmem:[#allocation3 + $0xd8] sm:$0xff]
    %v555 = vld [vmem:[#allocation3 + $0xe0] sm:$0xff]
    %v556 = vld [vmem:[#allocation3 + $0xe8] sm:$0xff]
    %v557 = vld [vmem:[#allocation3 + $0xf0] sm:$0xff]
    %v558 = vld [vmem:[#allocation3 + $0xf8] sm:$0xff]
    %v559 = vunpack.c.l.bf16 %v527
    %v560 = vunpack.c.h.bf16 %v527
    %v561 = vunpack.c.l.bf16 %v528
    %v562 = vunpack.c.h.bf16 %v528
    %v563 = vunpack.c.l.bf16 %v529
    %v564 = vunpack.c.h.bf16 %v529
    %v565 = vunpack.c.l.bf16 %v530
    %v566 = vunpack.c.h.bf16 %v530
    %v567 = vunpack.c.l.bf16 %v531
    %v568 = vunpack.c.h.bf16 %v531
    %v569 = vunpack.c.l.bf16 %v532
    %v570 = vunpack.c.h.bf16 %v532
    %v571 = vunpack.c.l.bf16 %v533
    %v572 = vunpack.c.h.bf16 %v533
    %v573 = vunpack.c.l.bf16 %v534
    %v574 = vunpack.c.h.bf16 %v534
    %v575 = vunpack.c.l.bf16 %v535
    %v576 = vunpack.c.h.bf16 %v535
    %v577 = vunpack.c.l.bf16 %v536
    %v578 = vunpack.c.h.bf16 %v536
    %v579 = vunpack.c.l.bf16 %v537
    %v580 = vunpack.c.h.bf16 %v537
    %v581 = vunpack.c.l.bf16 %v538
    %v582 = vunpack.c.h.bf16 %v538
    %v583 = vunpack.c.l.bf16 %v539
    %v584 = vunpack.c.h.bf16 %v539
    %v585 = vunpack.c.l.bf16 %v540
    %v586 = vunpack.c.h.bf16 %v540
    %v587 = vunpack.c.l.bf16 %v541
    %v588 = vunpack.c.h.bf16 %v541
    %v589 = vunpack.c.l.bf16 %v542
    %v590 = vunpack.c.h.bf16 %v542
    %v591 = vunpack.c.l.bf16 %v543
    %v592 = vunpack.c.h.bf16 %v543
    %v593 = vunpack.c.l.bf16 %v544
    %v594 = vunpack.c.h.bf16 %v544
    %v595 = vunpack.c.l.bf16 %v545
    %v596 = vunpack.c.h.bf16 %v545
    %v597 = vunpack.c.l.bf16 %v546
    %v598 = vunpack.c.h.bf16 %v546
    %v599 = vunpack.c.l.bf16 %v547
    %v600 = vunpack.c.h.bf16 %v547
    %v601 = vunpack.c.l.bf16 %v548
    %v602 = vunpack.c.h.bf16 %v548
    %v603 = vunpack.c.l.bf16 %v549
    %v604 = vunpack.c.h.bf16 %v549
    %v605 = vunpack.c.l.bf16 %v550
    %v606 = vunpack.c.h.bf16 %v550
    %v607 = vunpack.c.l.bf16 %v551
    %v608 = vunpack.c.h.bf16 %v551
    %v609 = vunpack.c.l.bf16 %v552
    %v610 = vunpack.c.h.bf16 %v552
    %v611 = vunpack.c.l.bf16 %v553
    %v612 = vunpack.c.h.bf16 %v553
    %v613 = vunpack.c.l.bf16 %v554
    %v614 = vunpack.c.h.bf16 %v554
    %v615 = vunpack.c.l.bf16 %v555
    %v616 = vunpack.c.h.bf16 %v555
    %v617 = vunpack.c.l.bf16 %v556
    %v618 = vunpack.c.h.bf16 %v556
    %v619 = vunpack.c.l.bf16 %v557
    %v620 = vunpack.c.h.bf16 %v557
    %v621 = vunpack.c.l.bf16 %v558
    %v622 = vunpack.c.h.bf16 %v558
    %v623 = vlog2.pop %v559
    %v624 = vmul.f32 %v623, 0.6931472
    %v625 = vlog2.pop %v560
    %v626 = vmul.f32 %v625, 0.6931472
    %v627 = vlog2.pop %v561
    %v628 = vmul.f32 %v627, 0.6931472
    %v629 = vlog2.pop %v562
    %v630 = vmul.f32 %v629, 0.6931472
    %v631 = vlog2.pop %v563
    %v632 = vmul.f32 %v631, 0.6931472
    %v633 = vlog2.pop %v564
    %v634 = vmul.f32 %v633, 0.6931472
    %v635 = vlog2.pop %v565
    %v636 = vmul.f32 %v635, 0.6931472
    %v637 = vlog2.pop %v566
    %v638 = vmul.f32 %v637, 0.6931472
    %v639 = vlog2.pop %v567
    %v640 = vmul.f32 %v639, 0.6931472
    %v641 = vlog2.pop %v568
    %v642 = vmul.f32 %v641, 0.6931472
    %v643 = vlog2.pop %v569
    %v644 = vmul.f32 %v643, 0.6931472
    %v645 = vlog2.pop %v570
    %v646 = vmul.f32 %v645, 0.6931472
    %v647 = vlog2.pop %v571
    %v648 = vmul.f32 %v647, 0.6931472
    %v649 = vlog2.pop %v572
    %v650 = vmul.f32 %v649, 0.6931472
    %v651 = vlog2.pop %v573
    %v652 = vmul.f32 %v651, 0.6931472
    %v653 = vlog2.pop %v574
    %v654 = vmul.f32 %v653, 0.6931472
    %v655 = vlog2.pop %v575
    %v656 = vmul.f32 %v655, 0.6931472
    %v657 = vlog2.pop %v576
    %v658 = vmul.f32 %v657, 0.6931472
    %v659 = vlog2.pop %v577
    %v660 = vmul.f32 %v659, 0.6931472
    %v661 = vlog2.pop %v578
    %v662 = vmul.f32 %v661, 0.6931472
    %v663 = vlog2.pop %v579
    %v664 = vmul.f32 %v663, 0.6931472
    %v665 = vlog2.pop %v580
    %v666 = vmul.f32 %v665, 0.6931472
    %v667 = vlog2.pop %v581
    %v668 = vmul.f32 %v667, 0.6931472
    %v669 = vlog2.pop %v582
    %v670 = vmul.f32 %v669, 0.6931472
    %v671 = vlog2.pop %v583
    %v672 = vmul.f32 %v671, 0.6931472
    %v673 = vlog2.pop %v584
    %v674 = vmul.f32 %v673, 0.6931472
    %v675 = vlog2.pop %v585
    %v676 = vmul.f32 %v675, 0.6931472
    %v677 = vlog2.pop %v586
    %v678 = vmul.f32 %v677, 0.6931472
    %v679 = vlog2.pop %v587
    %v680 = vmul.f32 %v679, 0.6931472
    %v681 = vlog2.pop %v588
    %v682 = vmul.f32 %v681, 0.6931472
    %v683 = vlog2.pop %v589
    %v684 = vmul.f32 %v683, 0.6931472
    %v685 = vlog2.pop %v590
    %v686 = vmul.f32 %v685, 0.6931472
    %v687 = vlog2.pop %v591
    %v688 = vmul.f32 %v687, 0.6931472
    %v689 = vlog2.pop %v592
    %v690 = vmul.f32 %v689, 0.6931472
    %v691 = vlog2.pop %v593
    %v692 = vmul.f32 %v691, 0.6931472
    %v693 = vlog2.pop %v594
    %v694 = vmul.f32 %v693, 0.6931472
    %v695 = vlog2.pop %v595
    %v696 = vmul.f32 %v695, 0.6931472
    %v697 = vlog2.pop %v596
    %v698 = vmul.f32 %v697, 0.6931472
    %v699 = vlog2.pop %v597
    %v700 = vmul.f32 %v699, 0.6931472
    %v701 = vlog2.pop %v598
    %v702 = vmul.f32 %v701, 0.6931472
    %v703 = vlog2.pop %v599
    %v704 = vmul.f32 %v703, 0.6931472
    %v705 = vlog2.pop %v600
    %v706 = vmul.f32 %v705, 0.6931472
    %v707 = vlog2.pop %v601
    %v708 = vmul.f32 %v707, 0.6931472
    %v709 = vlog2.pop %v602
    %v710 = vmul.f32 %v709, 0.6931472
    %v711 = vlog2.pop %v603
    %v712 = vmul.f32 %v711, 0.6931472
    %v713 = vlog2.pop %v604
    %v714 = vmul.f32 %v713, 0.6931472
    %v715 = vlog2.pop %v605
    %v716 = vmul.f32 %v715, 0.6931472
    %v717 = vlog2.pop %v606
    %v718 = vmul.f32 %v717, 0.6931472
    %v719 = vlog2.pop %v607
    %v720 = vmul.f32 %v719, 0.6931472
    %v721 = vlog2.pop %v608
    %v722 = vmul.f32 %v721, 0.6931472
    %v723 = vlog2.pop %v609
    %v724 = vmul.f32 %v723, 0.6931472
    %v725 = vlog2.pop %v610
    %v726 = vmul.f32 %v725, 0.6931472
    %v727 = vlog2.pop %v611
    %v728 = vmul.f32 %v727, 0.6931472
    %v729 = vlog2.pop %v612
    %v730 = vmul.f32 %v729, 0.6931472
    %v731 = vlog2.pop %v613
    %v732 = vmul.f32 %v731, 0.6931472
    %v733 = vlog2.pop %v614
    %v734 = vmul.f32 %v733, 0.6931472
    %v735 = vlog2.pop %v615
    %v736 = vmul.f32 %v735, 0.6931472
    %v737 = vlog2.pop %v616
    %v738 = vmul.f32 %v737, 0.6931472
    %v739 = vlog2.pop %v617
    %v740 = vmul.f32 %v739, 0.6931472
    %v741 = vlog2.pop %v618
    %v742 = vmul.f32 %v741, 0.6931472
    %v743 = vlog2.pop %v619
    %v744 = vmul.f32 %v743, 0.6931472
    %v745 = vlog2.pop %v620
    %v746 = vmul.f32 %v745, 0.6931472
    %v747 = vlog2.pop %v621
    %v748 = vmul.f32 %v747, 0.6931472
    %v749 = vlog2.pop %v622
    %v750 = vmul.f32 %v749, 0.6931472
    %v751 = vmax.f32 %v624, -100.0
    %v752 = vmax.f32 %v626, -100.0
    %v753 = vmax.f32 %v628, -100.0
    %v754 = vmax.f32 %v630, -100.0
    %v755 = vmax.f32 %v632, -100.0
    %v756 = vmax.f32 %v634, -100.0
    %v757 = vmax.f32 %v636, -100.0
    %v758 = vmax.f32 %v638, -100.0
    %v759 = vmax.f32 %v640, -100.0
    %v760 = vmax.f32 %v642, -100.0
    %v761 = vmax.f32 %v644, -100.0
    %v762 = vmax.f32 %v646, -100.0
    %v763 = vmax.f32 %v648, -100.0
    %v764 = vmax.f32 %v650, -100.0
    %v765 = vmax.f32 %v652, -100.0
    %v766 = vmax.f32 %v654, -100.0
    %v767 = vmax.f32 %v656, -100.0
    %v768 = vmax.f32 %v658, -100.0
    %v769 = vmax.f32 %v660, -100.0
    %v770 = vmax.f32 %v662, -100.0
    %v771 = vmax.f32 %v664, -100.0
    %v772 = vmax.f32 %v666, -100.0
    %v773 = vmax.f32 %v668, -100.0
    %v774 = vmax.f32 %v670, -100.0
    %v775 = vmax.f32 %v672, -100.0
    %v776 = vmax.f32 %v674, -100.0
    %v777 = vmax.f32 %v676, -100.0
    %v778 = vmax.f32 %v678, -100.0
    %v779 = vmax.f32 %v680, -100.0
    %v780 = vmax.f32 %v682, -100.0
    %v781 = vmax.f32 %v684, -100.0
    %v782 = vmax.f32 %v686, -100.0
    %v783 = vmax.f32 %v688, -100.0
    %v784 = vmax.f32 %v690, -100.0
    %v785 = vmax.f32 %v692, -100.0
    %v786 = vmax.f32 %v694, -100.0
    %v787 = vmax.f32 %v696, -100.0
    %v788 = vmax.f32 %v698, -100.0
    %v789 = vmax.f32 %v700, -100.0
    %v790 = vmax.f32 %v702, -100.0
    %v791 = vmax.f32 %v704, -100.0
    %v792 = vmax.f32 %v706, -100.0
    %v793 = vmax.f32 %v708, -100.0
    %v794 = vmax.f32 %v710, -100.0
    %v795 = vmax.f32 %v712, -100.0
    %v796 = vmax.f32 %v714, -100.0
    %v797 = vmax.f32 %v716, -100.0
    %v798 = vmax.f32 %v718, -100.0
    %v799 = vmax.f32 %v720, -100.0
    %v800 = vmax.f32 %v722, -100.0
    %v801 = vmax.f32 %v724, -100.0
    %v802 = vmax.f32 %v726, -100.0
    %v803 = vmax.f32 %v728, -100.0
    %v804 = vmax.f32 %v730, -100.0
    %v805 = vmax.f32 %v732, -100.0
    %v806 = vmax.f32 %v734, -100.0
    %v807 = vmax.f32 %v736, -100.0
    %v808 = vmax.f32 %v738, -100.0
    %v809 = vmax.f32 %v740, -100.0
    %v810 = vmax.f32 %v742, -100.0
    %v811 = vmax.f32 %v744, -100.0
    %v812 = vmax.f32 %v746, -100.0
    %v813 = vmax.f32 %v748, -100.0
    %v814 = vmax.f32 %v750, -100.0
    %v815 = vsub.f32 1.0, %v559
    %v816 = vsub.f32 1.0, %v560
    %v817 = vsub.f32 1.0, %v561
    %v818 = vsub.f32 1.0, %v562
    %v819 = vsub.f32 1.0, %v563
    %v820 = vsub.f32 1.0, %v564
    %v821 = vsub.f32 1.0, %v565
    %v822 = vsub.f32 1.0, %v566
    %v823 = vsub.f32 1.0, %v567
    %v824 = vsub.f32 1.0, %v568
    %v825 = vsub.f32 1.0, %v569
    %v826 = vsub.f32 1.0, %v570
    %v827 = vsub.f32 1.0, %v571
    %v828 = vsub.f32 1.0, %v572
    %v829 = vsub.f32 1.0, %v573
    %v830 = vsub.f32 1.0, %v574
    %v831 = vsub.f32 1.0, %v575
    %v832 = vsub.f32 1.0, %v576
    %v833 = vsub.f32 1.0, %v577
    %v834 = vsub.f32 1.0, %v578
    %v835 = vsub.f32 1.0, %v579
    %v836 = vsub.f32 1.0, %v580
    %v837 = vsub.f32 1.0, %v581
    %v838 = vsub.f32 1.0, %v582
    %v839 = vsub.f32 1.0, %v583
    %v840 = vsub.f32 1.0, %v584
    %v841 = vsub.f32 1.0, %v585
    %v842 = vsub.f32 1.0, %v586
    %v843 = vsub.f32 1.0, %v587
    %v844 = vsub.f32 1.0, %v588
    %v845 = vsub.f32 1.0, %v589
    %v846 = vsub.f32 1.0, %v590
    %v847 = vsub.f32 1.0, %v591
    %v848 = vsub.f32 1.0, %v592
    %v849 = vsub.f32 1.0, %v593
    %v850 = vsub.f32 1.0, %v594
    %v851 = vsub.f32 1.0, %v595
    %v852 = vsub.f32 1.0, %v596
    %v853 = vsub.f32 1.0, %v597
    %v854 = vsub.f32 1.0, %v598
    %v855 = vsub.f32 1.0, %v599
    %v856 = vsub.f32 1.0, %v600
    %v857 = vsub.f32 1.0, %v601
    %v858 = vsub.f32 1.0, %v602
    %v859 = vsub.f32 1.0, %v603
    %v860 = vsub.f32 1.0, %v604
    %v861 = vsub.f32 1.0, %v605
    %v862 = vsub.f32 1.0, %v606
    %v863 = vsub.f32 1.0, %v607
    %v864 = vsub.f32 1.0, %v608
    %v865 = vsub.f32 1.0, %v609
    %v866 = vsub.f32 1.0, %v610
    %v867 = vsub.f32 1.0, %v611
    %v868 = vsub.f32 1.0, %v612
    %v869 = vsub.f32 1.0, %v613
    %v870 = vsub.f32 1.0, %v614
    %v871 = vsub.f32 1.0, %v615
    %v872 = vsub.f32 1.0, %v616
    %v873 = vsub.f32 1.0, %v617
    %v874 = vsub.f32 1.0, %v618
    %v875 = vsub.f32 1.0, %v619
    %v876 = vsub.f32 1.0, %v620
    %v877 = vsub.f32 1.0, %v621
    %v878 = vsub.f32 1.0, %v622
    %v879 = vlog2.pop %v815
    %v880 = vmul.f32 %v879, 0.6931472
    %v881 = vlog2.pop %v816
    %v882 = vmul.f32 %v881, 0.6931472
    %v883 = vlog2.pop %v817
    %v884 = vmul.f32 %v883, 0.6931472
    %v885 = vlog2.pop %v818
    %v886 = vmul.f32 %v885, 0.6931472
    %v887 = vlog2.pop %v819
    %v888 = vmul.f32 %v887, 0.6931472
    %v889 = vlog2.pop %v820
    %v890 = vmul.f32 %v889, 0.6931472
    %v891 = vlog2.pop %v821
    %v892 = vmul.f32 %v891, 0.6931472
    %v893 = vlog2.pop %v822
    %v894 = vmul.f32 %v893, 0.6931472
    %v895 = vlog2.pop %v823
    %v896 = vmul.f32 %v895, 0.6931472
    %v897 = vlog2.pop %v824
    %v898 = vmul.f32 %v897, 0.6931472
    %v899 = vlog2.pop %v825
    %v900 = vmul.f32 %v899, 0.6931472
    %v901 = vlog2.pop %v826
    %v902 = vmul.f32 %v901, 0.6931472
    %v903 = vlog2.pop %v827
    %v904 = vmul.f32 %v903, 0.6931472
    %v905 = vlog2.pop %v828
    %v906 = vmul.f32 %v905, 0.6931472
    %v907 = vlog2.pop %v829
    %v908 = vmul.f32 %v907, 0.6931472
    %v909 = vlog2.pop %v830
    %v910 = vmul.f32 %v909, 0.6931472
    %v911 = vlog2.pop %v831
    %v912 = vmul.f32 %v911, 0.6931472
    %v913 = vlog2.pop %v832
    %v914 = vmul.f32 %v913, 0.6931472
    %v915 = vlog2.pop %v833
    %v916 = vmul.f32 %v915, 0.6931472
    %v917 = vlog2.pop %v834
    %v918 = vmul.f32 %v917, 0.6931472
    %v919 = vlog2.pop %v835
    %v920 = vmul.f32 %v919, 0.6931472
    %v921 = vlog2.pop %v836
    %v922 = vmul.f32 %v921, 0.6931472
    %v923 = vlog2.pop %v837
    %v924 = vmul.f32 %v923, 0.6931472
    %v925 = vlog2.pop %v838
    %v926 = vmul.f32 %v925, 0.6931472
    %v927 = vlog2.pop %v839
    %v928 = vmul.f32 %v927, 0.6931472
    %v929 = vlog2.pop %v840
    %v930 = vmul.f32 %v929, 0.6931472
    %v931 = vlog2.pop %v841
    %v932 = vmul.f32 %v931, 0.6931472
    %v933 = vlog2.pop %v842
    %v934 = vmul.f32 %v933, 0.6931472
    %v935 = vlog2.pop %v843
    %v936 = vmul.f32 %v935, 0.6931472
    %v937 = vlog2.pop %v844
    %v938 = vmul.f32 %v937, 0.6931472
    %v939 = vlog2.pop %v845
    %v940 = vmul.f32 %v939, 0.6931472
    %v941 = vlog2.pop %v846
    %v942 = vmul.f32 %v941, 0.6931472
    %v943 = vlog2.pop %v847
    %v944 = vmul.f32 %v943, 0.6931472
    %v945 = vlog2.pop %v848
    %v946 = vmul.f32 %v945, 0.6931472
    %v947 = vlog2.pop %v849
    %v948 = vmul.f32 %v947, 0.6931472
    %v949 = vlog2.pop %v850
    %v950 = vmul.f32 %v949, 0.6931472
    %v951 = vlog2.pop %v851
    %v952 = vmul.f32 %v951, 0.6931472
    %v953 = vlog2.pop %v852
    %v954 = vmul.f32 %v953, 0.6931472
    %v955 = vlog2.pop %v853
    %v956 = vmul.f32 %v955, 0.6931472
    %v957 = vlog2.pop %v854
    %v958 = vmul.f32 %v957, 0.6931472
    %v959 = vlog2.pop %v855
    %v960 = vmul.f32 %v959, 0.6931472
    %v961 = vlog2.pop %v856
    %v962 = vmul.f32 %v961, 0.6931472
    %v963 = vlog2.pop %v857
    %v964 = vmul.f32 %v963, 0.6931472
    %v965 = vlog2.pop %v858
    %v966 = vmul.f32 %v965, 0.6931472
    %v967 = vlog2.pop %v859
    %v968 = vmul.f32 %v967, 0.6931472
    %v969 = vlog2.pop %v860
    %v970 = vmul.f32 %v969, 0.6931472
    %v971 = vlog2.pop %v861
    %v972 = vmul.f32 %v971, 0.6931472
    %v973 = vlog2.pop %v862
    %v974 = vmul.f32 %v973, 0.6931472
    %v975 = vlog2.pop %v863
    %v976 = vmul.f32 %v975, 0.6931472
    %v977 = vlog2.pop %v864
    %v978 = vmul.f32 %v977, 0.6931472
    %v979 = vlog2.pop %v865
    %v980 = vmul.f32 %v979, 0.6931472
    %v981 = vlog2.pop %v866
    %v982 = vmul.f32 %v981, 0.6931472
    %v983 = vlog2.pop %v867
    %v984 = vmul.f32 %v983, 0.6931472
    %v985 = vlog2.pop %v868
    %v986 = vmul.f32 %v985, 0.6931472
    %v987 = vlog2.pop %v869
    %v988 = vmul.f32 %v987, 0.6931472
    %v989 = vlog2.pop %v870
    %v990 = vmul.f32 %v989, 0.6931472
    %v991 = vlog2.pop %v871
    %v992 = vmul.f32 %v991, 0.6931472
    %v993 = vlog2.pop %v872
    %v994 = vmul.f32 %v993, 0.6931472
    %v995 = vlog2.pop %v873
    %v996 = vmul.f32 %v995, 0.6931472
    %v997 = vlog2.pop %v874
    %v998 = vmul.f32 %v997, 0.6931472
    %v999 = vlog2.pop %v875
    %v1000 = vmul.f32 %v999, 0.6931472
    %v1001 = vlog2.pop %v876
    %v1002 = vmul.f32 %v1001, 0.6931472
    %v1003 = vlog2.pop %v877
    %v1004 = vmul.f32 %v1003, 0.6931472
    %v1005 = vlog2.pop %v878
    %v1006 = vmul.f32 %v1005, 0.6931472
    %v1007 = vmax.f32 %v880, -100.0
    %v1008 = vmax.f32 %v882, -100.0
    %v1009 = vmax.f32 %v884, -100.0
    %v1010 = vmax.f32 %v886, -100.0
    %v1011 = vmax.f32 %v888, -100.0
    %v1012 = vmax.f32 %v890, -100.0
    %v1013 = vmax.f32 %v892, -100.0
    %v1014 = vmax.f32 %v894, -100.0
    %v1015 = vmax.f32 %v896, -100.0
    %v1016 = vmax.f32 %v898, -100.0
    %v1017 = vmax.f32 %v900, -100.0
    %v1018 = vmax.f32 %v902, -100.0
    %v1019 = vmax.f32 %v904, -100.0
    %v1020 = vmax.f32 %v906, -100.0
    %v1021 = vmax.f32 %v908, -100.0
    %v1022 = vmax.f32 %v910, -100.0
    %v1023 = vmax.f32 %v912, -100.0
    %v1024 = vmax.f32 %v914, -100.0
    %v1025 = vmax.f32 %v916, -100.0
    %v1026 = vmax.f32 %v918, -100.0
    %v1027 = vmax.f32 %v920, -100.0
    %v1028 = vmax.f32 %v922, -100.0
    %v1029 = vmax.f32 %v924, -100.0
    %v1030 = vmax.f32 %v926, -100.0
    %v1031 = vmax.f32 %v928, -100.0
    %v1032 = vmax.f32 %v930, -100.0
    %v1033 = vmax.f32 %v932, -100.0
    %v1034 = vmax.f32 %v934, -100.0
    %v1035 = vmax.f32 %v936, -100.0
    %v1036 = vmax.f32 %v938, -100.0
    %v1037 = vmax.f32 %v940, -100.0
    %v1038 = vmax.f32 %v942, -100.0
    %v1039 = vmax.f32 %v944, -100.0
    %v1040 = vmax.f32 %v946, -100.0
    %v1041 = vmax.f32 %v948, -100.0
    %v1042 = vmax.f32 %v950, -100.0
    %v1043 = vmax.f32 %v952, -100.0
    %v1044 = vmax.f32 %v954, -100.0
    %v1045 = vmax.f32 %v956, -100.0
    %v1046 = vmax.f32 %v958, -100.0
    %v1047 = vmax.f32 %v960, -100.0
    %v1048 = vmax.f32 %v962, -100.0
    %v1049 = vmax.f32 %v964, -100.0
    %v1050 = vmax.f32 %v966, -100.0
    %v1051 = vmax.f32 %v968, -100.0
    %v1052 = vmax.f32 %v970, -100.0
    %v1053 = vmax.f32 %v972, -100.0
    %v1054 = vmax.f32 %v974, -100.0
    %v1055 = vmax.f32 %v976, -100.0
    %v1056 = vmax.f32 %v978, -100.0
    %v1057 = vmax.f32 %v980, -100.0
    %v1058 = vmax.f32 %v982, -100.0
    %v1059 = vmax.f32 %v984, -100.0
    %v1060 = vmax.f32 %v986, -100.0
    %v1061 = vmax.f32 %v988, -100.0
    %v1062 = vmax.f32 %v990, -100.0
    %v1063 = vmax.f32 %v992, -100.0
    %v1064 = vmax.f32 %v994, -100.0
    %v1065 = vmax.f32 %v996, -100.0
    %v1066 = vmax.f32 %v998, -100.0
    %v1067 = vmax.f32 %v1000, -100.0
    %v1068 = vmax.f32 %v1002, -100.0
    %v1069 = vmax.f32 %v1004, -100.0
    %v1070 = vmax.f32 %v1006, -100.0
    %v1071 = vmul.f32 %v142, %v751
    %v1072 = vmul.f32 %v144, %v752
    %v1073 = vmul.f32 %v255, %v753
    %v1074 = vmul.f32 %v257, %v754
    %v1075 = vmul.f32 %v368, %v755
    %v1076 = vmul.f32 %v370, %v756
    %v1077 = vmul.f32 %v481, %v757
    %v1078 = vmul.f32 %v483, %v758
    %v1079 = vmul.f32 %v148, %v759
    %v1080 = vmul.f32 %v150, %v760
    %v1081 = vmul.f32 %v261, %v761
    %v1082 = vmul.f32 %v263, %v762
    %v1083 = vmul.f32 %v374, %v763
    %v1084 = vmul.f32 %v376, %v764
    %v1085 = vmul.f32 %v487, %v765
    %v1086 = vmul.f32 %v489, %v766
    %v1087 = vmul.f32 %v154, %v767
    %v1088 = vmul.f32 %v156, %v768
    %v1089 = vmul.f32 %v267, %v769
    %v1090 = vmul.f32 %v269, %v770
    %v1091 = vmul.f32 %v380, %v771
    %v1092 = vmul.f32 %v382, %v772
    %v1093 = vmul.f32 %v493, %v773
    %v1094 = vmul.f32 %v495, %v774
    %v1095 = vmul.f32 %v160, %v775
    %v1096 = vmul.f32 %v162, %v776
    %v1097 = vmul.f32 %v273, %v777
    %v1098 = vmul.f32 %v275, %v778
    %v1099 = vmul.f32 %v386, %v779
    %v1100 = vmul.f32 %v388, %v780
    %v1101 = vmul.f32 %v499, %v781
    %v1102 = vmul.f32 %v501, %v782
    %v1103 = vmul.f32 %v166, %v783
    %v1104 = vmul.f32 %v168, %v784
    %v1105 = vmul.f32 %v279, %v785
    %v1106 = vmul.f32 %v281, %v786
    %v1107 = vmul.f32 %v392, %v787
    %v1108 = vmul.f32 %v394, %v788
    %v1109 = vmul.f32 %v505, %v789
    %v1110 = vmul.f32 %v507, %v790
    %v1111 = vmul.f32 %v172, %v791
    %v1112 = vmul.f32 %v174, %v792
    %v1113 = vmul.f32 %v285, %v793
    %v1114 = vmul.f32 %v287, %v794
    %v1115 = vmul.f32 %v398, %v795
    %v1116 = vmul.f32 %v400, %v796
    %v1117 = vmul.f32 %v511, %v797
    %v1118 = vmul.f32 %v513, %v798
    %v1119 = vmul.f32 %v178, %v799
    %v1120 = vmul.f32 %v180, %v800
    %v1121 = vmul.f32 %v291, %v801
    %v1122 = vmul.f32 %v293, %v802
    %v1123 = vmul.f32 %v404, %v803
    %v1124 = vmul.f32 %v406, %v804
    %v1125 = vmul.f32 %v517, %v805
    %v1126 = vmul.f32 %v519, %v806
    %v1127 = vmul.f32 %v184, %v807
    %v1128 = vmul.f32 %v186, %v808
    %v1129 = vmul.f32 %v297, %v809
    %v1130 = vmul.f32 %v299, %v810
    %v1131 = vmul.f32 %v410, %v811
    %v1132 = vmul.f32 %v412, %v812
    %v1133 = vmul.f32 %v523, %v813
    %v1134 = vmul.f32 %v525, %v814
    %v1135 = vsub.f32 1.0, %v142
    %v1136 = vsub.f32 1.0, %v144
    %v1137 = vsub.f32 1.0, %v255
    %v1138 = vsub.f32 1.0, %v257
    %v1139 = vsub.f32 1.0, %v368
    %v1140 = vsub.f32 1.0, %v370
    %v1141 = vsub.f32 1.0, %v481
    %v1142 = vsub.f32 1.0, %v483
    %v1143 = vsub.f32 1.0, %v148
    %v1144 = vsub.f32 1.0, %v150
    %v1145 = vsub.f32 1.0, %v261
    %v1146 = vsub.f32 1.0, %v263
    %v1147 = vsub.f32 1.0, %v374
    %v1148 = vsub.f32 1.0, %v376
    %v1149 = vsub.f32 1.0, %v487
    %v1150 = vsub.f32 1.0, %v489
    %v1151 = vsub.f32 1.0, %v154
    %v1152 = vsub.f32 1.0, %v156
    %v1153 = vsub.f32 1.0, %v267
    %v1154 = vsub.f32 1.0, %v269
    %v1155 = vsub.f32 1.0, %v380
    %v1156 = vsub.f32 1.0, %v382
    %v1157 = vsub.f32 1.0, %v493
    %v1158 = vsub.f32 1.0, %v495
    %v1159 = vsub.f32 1.0, %v160
    %v1160 = vsub.f32 1.0, %v162
    %v1161 = vsub.f32 1.0, %v273
    %v1162 = vsub.f32 1.0, %v275
    %v1163 = vsub.f32 1.0, %v386
    %v1164 = vsub.f32 1.0, %v388
    %v1165 = vsub.f32 1.0, %v499
    %v1166 = vsub.f32 1.0, %v501
    %v1167 = vsub.f32 1.0, %v166
    %v1168 = vsub.f32 1.0, %v168
    %v1169 = vsub.f32 1.0, %v279
    %v1170 = vsub.f32 1.0, %v281
    %v1171 = vsub.f32 1.0, %v392
    %v1172 = vsub.f32 1.0, %v394
    %v1173 = vsub.f32 1.0, %v505
    %v1174 = vsub.f32 1.0, %v507
    %v1175 = vsub.f32 1.0, %v172
    %v1176 = vsub.f32 1.0, %v174
    %v1177 = vsub.f32 1.0, %v285
    %v1178 = vsub.f32 1.0, %v287
    %v1179 = vsub.f32 1.0, %v398
    %v1180 = vsub.f32 1.0, %v400
    %v1181 = vsub.f32 1.0, %v511
    %v1182 = vsub.f32 1.0, %v513
    %v1183 = vsub.f32 1.0, %v178
    %v1184 = vsub.f32 1.0, %v180
    %v1185 = vsub.f32 1.0, %v291
    %v1186 = vsub.f32 1.0, %v293
    %v1187 = vsub.f32 1.0, %v404
    %v1188 = vsub.f32 1.0, %v406
    %v1189 = vsub.f32 1.0, %v517
    %v1190 = vsub.f32 1.0, %v519
    %v1191 = vsub.f32 1.0, %v184
    %v1192 = vsub.f32 1.0, %v186
    %v1193 = vsub.f32 1.0, %v297
    %v1194 = vsub.f32 1.0, %v299
    %v1195 = vsub.f32 1.0, %v410
    %v1196 = vsub.f32 1.0, %v412
    %v1197 = vsub.f32 1.0, %v523
    %v1198 = vsub.f32 1.0, %v525
    %v1199 = vmul.f32 %v1135, %v1007
    %v1200 = vmul.f32 %v1136, %v1008
    %v1201 = vmul.f32 %v1137, %v1009
    %v1202 = vmul.f32 %v1138, %v1010
    %v1203 = vmul.f32 %v1139, %v1011
    %v1204 = vmul.f32 %v1140, %v1012
    %v1205 = vmul.f32 %v1141, %v1013
    %v1206 = vmul.f32 %v1142, %v1014
    %v1207 = vmul.f32 %v1143, %v1015
    %v1208 = vmul.f32 %v1144, %v1016
    %v1209 = vmul.f32 %v1145, %v1017
    %v1210 = vmul.f32 %v1146, %v1018
    %v1211 = vmul.f32 %v1147, %v1019
    %v1212 = vmul.f32 %v1148, %v1020
    %v1213 = vmul.f32 %v1149, %v1021
    %v1214 = vmul.f32 %v1150, %v1022
    %v1215 = vmul.f32 %v1151, %v1023
    %v1216 = vmul.f32 %v1152, %v1024
    %v1217 = vmul.f32 %v1153, %v1025
    %v1218 = vmul.f32 %v1154, %v1026
    %v1219 = vmul.f32 %v1155, %v1027
    %v1220 = vmul.f32 %v1156, %v1028
    %v1221 = vmul.f32 %v1157, %v1029
    %v1222 = vmul.f32 %v1158, %v1030
    %v1223 = vmul.f32 %v1159, %v1031
    %v1224 = vmul.f32 %v1160, %v1032
    %v1225 = vmul.f32 %v1161, %v1033
    %v1226 = vmul.f32 %v1162, %v1034
    %v1227 = vmul.f32 %v1163, %v1035
    %v1228 = vmul.f32 %v1164, %v1036
    %v1229 = vmul.f32 %v1165, %v1037
    %v1230 = vmul.f32 %v1166, %v1038
    %v1231 = vmul.f32 %v1167, %v1039
    %v1232 = vmul.f32 %v1168, %v1040
    %v1233 = vmul.f32 %v1169, %v1041
    %v1234 = vmul.f32 %v1170, %v1042
    %v1235 = vmul.f32 %v1171, %v1043
    %v1236 = vmul.f32 %v1172, %v1044
    %v1237 = vmul.f32 %v1173, %v1045
    %v1238 = vmul.f32 %v1174, %v1046
    %v1239 = vmul.f32 %v1175, %v1047
    %v1240 = vmul.f32 %v1176, %v1048
    %v1241 = vmul.f32 %v1177, %v1049
    %v1242 = vmul.f32 %v1178, %v1050
    %v1243 = vmul.f32 %v1179, %v1051
    %v1244 = vmul.f32 %v1180, %v1052
    %v1245 = vmul.f32 %v1181, %v1053
    %v1246 = vmul.f32 %v1182, %v1054
    %v1247 = vmul.f32 %v1183, %v1055
    %v1248 = vmul.f32 %v1184, %v1056
    %v1249 = vmul.f32 %v1185, %v1057
    %v1250 = vmul.f32 %v1186, %v1058
    %v1251 = vmul.f32 %v1187, %v1059
    %v1252 = vmul.f32 %v1188, %v1060
    %v1253 = vmul.f32 %v1189, %v1061
    %v1254 = vmul.f32 %v1190, %v1062
    %v1255 = vmul.f32 %v1191, %v1063
    %v1256 = vmul.f32 %v1192, %v1064
    %v1257 = vmul.f32 %v1193, %v1065
    %v1258 = vmul.f32 %v1194, %v1066
    %v1259 = vmul.f32 %v1195, %v1067
    %v1260 = vmul.f32 %v1196, %v1068
    %v1261 = vmul.f32 %v1197, %v1069
    %v1262 = vmul.f32 %v1198, %v1070
    %v1263 = vadd.f32 %v1071, %v1199
    %v1264 = vadd.f32 %v1072, %v1200
    %v1265 = vadd.f32 %v1073, %v1201
    %v1266 = vadd.f32 %v1074, %v1202
    %v1267 = vadd.f32 %v1075, %v1203
    %v1268 = vadd.f32 %v1076, %v1204
    %v1269 = vadd.f32 %v1077, %v1205
    %v1270 = vadd.f32 %v1078, %v1206
    %v1271 = vadd.f32 %v1079, %v1207
    %v1272 = vadd.f32 %v1080, %v1208
    %v1273 = vadd.f32 %v1081, %v1209
    %v1274 = vadd.f32 %v1082, %v1210
    %v1275 = vadd.f32 %v1083, %v1211
    %v1276 = vadd.f32 %v1084, %v1212
    %v1277 = vadd.f32 %v1085, %v1213
    %v1278 = vadd.f32 %v1086, %v1214
    %v1279 = vadd.f32 %v1087, %v1215
    %v1280 = vadd.f32 %v1088, %v1216
    %v1281 = vadd.f32 %v1089, %v1217
    %v1282 = vadd.f32 %v1090, %v1218
    %v1283 = vadd.f32 %v1091, %v1219
    %v1284 = vadd.f32 %v1092, %v1220
    %v1285 = vadd.f32 %v1093, %v1221
    %v1286 = vadd.f32 %v1094, %v1222
    %v1287 = vadd.f32 %v1095, %v1223
    %v1288 = vadd.f32 %v1096, %v1224
    %v1289 = vadd.f32 %v1097, %v1225
    %v1290 = vadd.f32 %v1098, %v1226
    %v1291 = vadd.f32 %v1099, %v1227
    %v1292 = vadd.f32 %v1100, %v1228
    %v1293 = vadd.f32 %v1101, %v1229
    %v1294 = vadd.f32 %v1102, %v1230
    %v1295 = vadd.f32 %v1103, %v1231
    %v1296 = vadd.f32 %v1104, %v1232
    %v1297 = vadd.f32 %v1105, %v1233
    %v1298 = vadd.f32 %v1106, %v1234
    %v1299 = vadd.f32 %v1107, %v1235
    %v1300 = vadd.f32 %v1108, %v1236
    %v1301 = vadd.f32 %v1109, %v1237
    %v1302 = vadd.f32 %v1110, %v1238
    %v1303 = vadd.f32 %v1111, %v1239
    %v1304 = vadd.f32 %v1112, %v1240
    %v1305 = vadd.f32 %v1113, %v1241
    %v1306 = vadd.f32 %v1114, %v1242
    %v1307 = vadd.f32 %v1115, %v1243
    %v1308 = vadd.f32 %v1116, %v1244
    %v1309 = vadd.f32 %v1117, %v1245
    %v1310 = vadd.f32 %v1118, %v1246
    %v1311 = vadd.f32 %v1119, %v1247
    %v1312 = vadd.f32 %v1120, %v1248
    %v1313 = vadd.f32 %v1121, %v1249
    %v1314 = vadd.f32 %v1122, %v1250
    %v1315 = vadd.f32 %v1123, %v1251
    %v1316 = vadd.f32 %v1124, %v1252
    %v1317 = vadd.f32 %v1125, %v1253
    %v1318 = vadd.f32 %v1126, %v1254
    %v1319 = vadd.f32 %v1127, %v1255
    %v1320 = vadd.f32 %v1128, %v1256
    %v1321 = vadd.f32 %v1129, %v1257
    %v1322 = vadd.f32 %v1130, %v1258
    %v1323 = vadd.f32 %v1131, %v1259
    %v1324 = vadd.f32 %v1132, %v1260
    %v1325 = vadd.f32 %v1133, %v1261
    %v1326 = vadd.f32 %v1134, %v1262
    %v1327 = vsub.f32 0.0, %v1263
    %v1328 = vsub.f32 0.0, %v1264
    %v1329 = vsub.f32 0.0, %v1265
    %v1330 = vsub.f32 0.0, %v1266
    %v1331 = vsub.f32 0.0, %v1267
    %v1332 = vsub.f32 0.0, %v1268
    %v1333 = vsub.f32 0.0, %v1269
    %v1334 = vsub.f32 0.0, %v1270
    %v1335 = vsub.f32 0.0, %v1271
    %v1336 = vsub.f32 0.0, %v1272
    %v1337 = vsub.f32 0.0, %v1273
    %v1338 = vsub.f32 0.0, %v1274
    %v1339 = vsub.f32 0.0, %v1275
    %v1340 = vsub.f32 0.0, %v1276
    %v1341 = vsub.f32 0.0, %v1277
    %v1342 = vsub.f32 0.0, %v1278
    %v1343 = vsub.f32 0.0, %v1279
    %v1344 = vsub.f32 0.0, %v1280
    %v1345 = vsub.f32 0.0, %v1281
    %v1346 = vsub.f32 0.0, %v1282
    %v1347 = vsub.f32 0.0, %v1283
    %v1348 = vsub.f32 0.0, %v1284
    %v1349 = vsub.f32 0.0, %v1285
    %v1350 = vsub.f32 0.0, %v1286
    %v1351 = vsub.f32 0.0, %v1287
    %v1352 = vsub.f32 0.0, %v1288
    %v1353 = vsub.f32 0.0, %v1289
    %v1354 = vsub.f32 0.0, %v1290
    %v1355 = vsub.f32 0.0, %v1291
    %v1356 = vsub.f32 0.0, %v1292
    %v1357 = vsub.f32 0.0, %v1293
    %v1358 = vsub.f32 0.0, %v1294
    %v1359 = vsub.f32 0.0, %v1295
    %v1360 = vsub.f32 0.0, %v1296
    %v1361 = vsub.f32 0.0, %v1297
    %v1362 = vsub.f32 0.0, %v1298
    %v1363 = vsub.f32 0.0, %v1299
    %v1364 = vsub.f32 0.0, %v1300
    %v1365 = vsub.f32 0.0, %v1301
    %v1366 = vsub.f32 0.0, %v1302
    %v1367 = vsub.f32 0.0, %v1303
    %v1368 = vsub.f32 0.0, %v1304
    %v1369 = vsub.f32 0.0, %v1305
    %v1370 = vsub.f32 0.0, %v1306
    %v1371 = vsub.f32 0.0, %v1307
    %v1372 = vsub.f32 0.0, %v1308
    %v1373 = vsub.f32 0.0, %v1309
    %v1374 = vsub.f32 0.0, %v1310
    %v1375 = vsub.f32 0.0, %v1311
    %v1376 = vsub.f32 0.0, %v1312
    %v1377 = vsub.f32 0.0, %v1313
    %v1378 = vsub.f32 0.0, %v1314
    %v1379 = vsub.f32 0.0, %v1315
    %v1380 = vsub.f32 0.0, %v1316
    %v1381 = vsub.f32 0.0, %v1317
    %v1382 = vsub.f32 0.0, %v1318
    %v1383 = vsub.f32 0.0, %v1319
    %v1384 = vsub.f32 0.0, %v1320
    %v1385 = vsub.f32 0.0, %v1321
    %v1386 = vsub.f32 0.0, %v1322
    %v1387 = vsub.f32 0.0, %v1323
    %v1388 = vsub.f32 0.0, %v1324
    %v1389 = vsub.f32 0.0, %v1325
    %v1390 = vsub.f32 0.0, %v1326
    %v1391 = vadd.f32 %v1327, %v1328
    %v1392 = vadd.f32 %v1335, %v1336
    %v1393 = vadd.f32 %v1343, %v1344
    %v1394 = vadd.f32 %v1351, %v1352
    %v1395 = vadd.f32 %v1359, %v1360
    %v1396 = vadd.f32 %v1367, %v1368
    %v1397 = vadd.f32 %v1375, %v1376
    %v1398 = vadd.f32 %v1383, %v1384
    %v1399 = vadd.f32 %v1391, %v1329
    %v1400 = vadd.f32 %v1392, %v1337
    %v1401 = vadd.f32 %v1393, %v1345
    %v1402 = vadd.f32 %v1394, %v1353
    %v1403 = vadd.f32 %v1395, %v1361
    %v1404 = vadd.f32 %v1396, %v1369
    %v1405 = vadd.f32 %v1397, %v1377
    %v1406 = vadd.f32 %v1398, %v1385
    %v1407 = vadd.f32 %v1399, %v1330
    %v1408 = vadd.f32 %v1400, %v1338
    %v1409 = vadd.f32 %v1401, %v1346
    %v1410 = vadd.f32 %v1402, %v1354
    %v1411 = vadd.f32 %v1403, %v1362
    %v1412 = vadd.f32 %v1404, %v1370
    %v1413 = vadd.f32 %v1405, %v1378
    %v1414 = vadd.f32 %v1406, %v1386
    %v1415 = vadd.f32 %v1407, %v1331
    %v1416 = vadd.f32 %v1408, %v1339
    %v1417 = vadd.f32 %v1409, %v1347
    %v1418 = vadd.f32 %v1410, %v1355
    %v1419 = vadd.f32 %v1411, %v1363
    %v1420 = vadd.f32 %v1412, %v1371
    %v1421 = vadd.f32 %v1413, %v1379
    %v1422 = vadd.f32 %v1414, %v1387
    %v1423 = vadd.f32 %v1415, %v1332
    %v1424 = vadd.f32 %v1416, %v1340
    %v1425 = vadd.f32 %v1417, %v1348
    %v1426 = vadd.f32 %v1418, %v1356
    %v1427 = vadd.f32 %v1419, %v1364
    %v1428 = vadd.f32 %v1420, %v1372
    %v1429 = vadd.f32 %v1421, %v1380
    %v1430 = vadd.f32 %v1422, %v1388
    %v1431 = vadd.f32 %v1423, %v1333
    %v1432 = vadd.f32 %v1424, %v1341
    %v1433 = vadd.f32 %v1425, %v1349
    %v1434 = vadd.f32 %v1426, %v1357
    %v1435 = vadd.f32 %v1427, %v1365
    %v1436 = vadd.f32 %v1428, %v1373
    %v1437 = vadd.f32 %v1429, %v1381
    %v1438 = vadd.f32 %v1430, %v1389
    %v1439 = vadd.f32 %v1431, %v1334
    %v1440 = vadd.f32 %v1432, %v1342
    %v1441 = vadd.f32 %v1433, %v1350
    %v1442 = vadd.f32 %v1434, %v1358
    %v1443 = vadd.f32 %v1435, %v1366
    %v1444 = vadd.f32 %v1436, %v1374
    %v1445 = vadd.f32 %v1437, %v1382
    %v1446 = vadd.f32 %v1438, %v1390
    %v1447 = vadd.f32 %v1439, %v1440
    %v1448 = vadd.f32 %v1447, %v1441
    %v1449 = vadd.f32 %v1448, %v1442
    %v1450 = vadd.f32 %v1449, %v1443
    %v1451 = vadd.f32 %v1450, %v1444
    %v1452 = vadd.f32 %v1451, %v1445
    %v1453 = vadd.f32 %v1452, %v1446
    %v1454 = vld [vmem:[#allocation2] sm:$0xff]
    %v1455 = vadd.f32 %v1454, %v1453
    %1456 = vst [vmem:[#allocation2] sm:$0xff] %v1455
    // Predicated region
    $region22: #{tpu_custom_call.1} parent=1 // pred_check
      %p1457 = pneg %p29
    $region23: #{tpu_custom_call.1} parent=1 // pred_check_branch
      %1459 = sbr.rel (%p1457) target = $region25
    $region24: #{tpu_custom_call.1} parent=1 // pred_region
      %v1460 = vld [vmem:[#allocation2] sm:$0xff]
      %1461 = vst [vmem:[#allocation6] sm:$0xff] %v1460
    $region25: #{tpu_custom_call.1} parent=1 // pred_fallthru
      _
    // Predicated region
    $region26: #{tpu_custom_call.1} parent=1 // pred_check
      _
    $region27: #{tpu_custom_call.1} parent=1 // pred_check_branch
      %1463 = sbr.rel (0) target = $region29
    $region28: #{tpu_custom_call.1} parent=1 // pred_region
      %s1465 = ssub.s32 128, 128
      %1466 = vsyncadd [#allocation5], %s1465
      %s1468 = sshll.u32 [#allocation6], 4
      %s1469 = int_to_ptr.vmem [resolvable:$true] %s1468
      %1471 = dma.vmem_to_hbm [thread:$0]  %s1469, 128, %s3, [#allocation5]
    $region29: #{tpu_custom_call.1} parent=1 // pred_fallthru
      _
    // Predicated region
    $region30: #{tpu_custom_call.1} parent=1 // pred_check
      _
    $region31: #{tpu_custom_call.1} parent=1 // pred_check_branch
      %1473 = sbr.rel (0) target = $region33
    $region32: #{tpu_custom_call.1} parent=1 // pred_region
      %1474 = dma.done [#allocation5], 128
    $region33: #{tpu_custom_call.1} parent=1 // pred_fallthru
      _
    %1475 = vsyncpa [#allocation4], 1
    %1476 = vsyncpa [#allocation5], 1

</llo_original>
